<compile_context>
chip_gen: v5e
topology: v5e:2x2
jax: 0.10.0
libtpu: 0.0.40
codegen_flags: <defaults>
</compile_context>

<pallas_src>
import math
import functools

import jax
import jax.numpy as jnp
from jax import lax
from jax.experimental import pallas as pl
from jax.experimental.pallas import tpu as pltpu  # noqa: F401  (kept for parity)

INPUT = 20        # LSTM input_size
HIDDEN = 20 * 2   # LSTM hidden_size (true width)
HP = 128          # lane-padded hidden width (one vreg lane tile)
FC1 = 20          # fc out_features
NEG_SLOPE = 0.01  # F.leaky_relu default


def seq2seq_att_kernel(x_ref, wih_ref, whh_ref, b_ref,
                       fc1_w_ref, fc1_b_ref, fc2_w_ref, fc2_b_ref,
                       out_ref, *, T, B):
    """Whole forward pass for one (tiny, sublane-padded) batch.

    x_ref    : (T*B, I)   f32  time-major flattened input, row = t*B + b
    wih_ref  : (I, 4*HP)  bf16 fused input->gate weights, gate g in lanes [g*HP, g*HP+H)
    whh_ref  : (HP, 4*HP) bf16 fused hidden->gate weights (pad rows/cols zero)
    b_ref    : (1, 4*HP)  f32  combined gate bias (b_ih + b_hh), pad lanes zero
    fc1_w    : (HP, FC1)  f32  pad rows zero;  fc1_b: (1, FC1)
    fc2_w    : (FC1, NN)  f32; fc2_b: (1, NN)
    out_ref  : (B, NN)    f32  (rows >= true batch are discarded by the wrapper)
    """
    Hp = whh_ref.shape[0]
    TB = T * B

    def sigmoid(v):
        # one EUP op (tanh) per gate instead of exp + divide
        return 0.5 * jnp.tanh(0.5 * v) + 0.5

    # -------- hoisted input projection for ALL timesteps (one bf16 matmul) ---
    xw = jnp.dot(x_ref[...].astype(jnp.bfloat16), wih_ref[...],
                 preferred_element_type=jnp.float32) + b_ref[...]   # (T*B, 4*HP)
    xw_t = [xw[t * B:(t + 1) * B, :] for t in range(T)]             # 8-aligned slices

    # -------- LSTM recurrence: one MXU op per step, fully unrolled -----------
    # W_hh is loop-invariant (read once) so its MXU weight push can be hoisted.
    whh = whh_ref[...]                                   # (HP, 4*HP) bf16
    h = jnp.zeros((B, Hp), jnp.float32)
    c = jnp.zeros((B, Hp), jnp.float32)
    hs = []
    for t in range(T):  # T static -> full unroll, static slices everywhere
        z = xw_t[t] + jnp.dot(h.astype(jnp.bfloat16), whh,
                              preferred_element_type=jnp.float32)   # (B, 4*HP)
        i_g = sigmoid(z[:, 0 * Hp:1 * Hp])   # gate slices are lane-aligned
        f_g = sigmoid(z[:, 1 * Hp:2 * Hp])
        g_g = jnp.tanh(z[:, 2 * Hp:3 * Hp])
        o_g = sigmoid(z[:, 3 * Hp:4 * Hp])
        c = f_g * c + i_g * g_g              # pad lanes stay exactly 0
        h = o_g * jnp.tanh(c)                # pad lanes stay exactly 0
        hs.append(h)
    Hs = jnp.concatenate(hs, axis=0)         # (T*B, HP), kept in registers

    # -------- attention, batched over B via block-diagonal masking -----------
    # (query == lstm output; dropout = identity)
    inv_sqrt_dk = 1.0 / math.sqrt(HIDDEN)    # true d_k = 40 (pad lanes are 0)
    scores = lax.dot_general(Hs, Hs, (((1,), (1,)), ((), ())),
                             preferred_element_type=jnp.float32) * inv_sqrt_dk
    row_b = lax.broadcasted_iota(jnp.int32, (TB, TB), 0) % B
    col_b = lax.broadcasted_iota(jnp.int32, (TB, TB), 1) % B
    scores = jnp.where(row_b == col_b, scores, -1e30)    # mask cross-batch keys
    scores = scores - jnp.max(scores, axis=-1, keepdims=True)
    e = jnp.exp(scores)
    inv_den = pl.reciprocal(jnp.sum(e, axis=-1, keepdims=True), approx=True)
    alpha = e * inv_den                                  # (T*B, T*B)

    # per-batch sum over the query axis as a tiny selector matmul
    # (avoids strided sublane gathers / relayouts)
    sel = (lax.broadcasted_iota(jnp.int32, (B, TB), 1) % B ==
           lax.broadcasted_iota(jnp.int32, (B, TB), 0)).astype(jnp.float32)
    w_att = jnp.dot(sel, alpha, preferred_element_type=jnp.float32)   # (B, T*B)
    context = jnp.dot(w_att, Hs, preferred_element_type=jnp.float32)  # (B, HP)

    # -------- fc -> leaky_relu -> fc2 -> leaky_relu ---------------------------
    z1 = jnp.dot(context, fc1_w_ref[...],
                 preferred_element_type=jnp.float32) + fc1_b_ref[...]
    a1 = jnp.where(z1 >= 0, z1, NEG_SLOPE * z1)
    z2 = jnp.dot(a1, fc2_w_ref[...],
                 preferred_element_type=jnp.float32) + fc2_b_ref[...]
    a2 = jnp.where(z2 >= 0, z2, NEG_SLOPE * z2)
    out_ref[...] = a2.astype(out_ref.dtype)


def init_params(key, n_next):
    """Deterministic parameter init matching PyTorch layer shapes.

    Returns (kernel_params, reference_params)."""
    H, I, F1, Hp = HIDDEN, INPUT, FC1, HP
    ks = jax.random.split(key, 8)
    bl = 1.0 / math.sqrt(H)
    w_ih = jax.random.uniform(ks[0], (4 * H, I), jnp.float32, -bl, bl)
    w_hh = jax.random.uniform(ks[1], (4 * H, H), jnp.float32, -bl, bl)
    b_ih = jax.random.uniform(ks[2], (4 * H,), jnp.float32, -bl, bl)
    b_hh = jax.random.uniform(ks[3], (4 * H,), jnp.float32, -bl, bl)
    fb1 = 1.0 / math.sqrt(H)
    fc1_w = jax.random.uniform(ks[4], (F1, H), jnp.float32, -fb1, fb1)
    fc1_b = jax.random.uniform(ks[5], (F1,), jnp.float32, -fb1, fb1)
    fb2 = 1.0 / math.sqrt(F1)
    fc2_w = jax.random.uniform(ks[6], (n_next, F1), jnp.float32, -fb2, fb2)
    fc2_b = jax.random.uniform(ks[7], (n_next,), jnp.float32, -fb2, fb2)

    # ---- reference layout (gate order i, f, g, o as in PyTorch) ----
    wih_r = jnp.transpose(w_ih.reshape(4, H, I), (0, 2, 1))   # (4, I, H)
    whh_r = jnp.transpose(w_hh.reshape(4, H, H), (0, 2, 1))   # (4, H, H)
    b_r = (b_ih + b_hh).reshape(4, 1, H)                      # (4, 1, H)
    w1_r = fc1_w.T                                            # (H, F1)
    b1_r = fc1_b.reshape(1, F1)
    w2_r = fc2_w.T                                            # (F1, n_next)
    b2_r = fc2_b.reshape(1, n_next)
    ref_params = (wih_r, whh_r, b_r, w1_r, b1_r, w2_r, b2_r)

    # ---- kernel layout: fused gates, each gate in its own 128-lane slot ----
    wih_f = jnp.zeros((I, 4 * Hp), jnp.float32)
    whh_f = jnp.zeros((Hp, 4 * Hp), jnp.float32)
    b_f = jnp.zeros((1, 4 * Hp), jnp.float32)
    for g in range(4):
        wih_f = wih_f.at[:, g * Hp:g * Hp + H].set(wih_r[g])
        whh_f = whh_f.at[:H, g * Hp:g * Hp + H].set(whh_r[g])
        b_f = b_f.at[:, g * Hp:g * Hp + H].set(b_r[g])
    w1_p = jnp.zeros((Hp, F1), jnp.float32).at[:H, :].set(w1_r)
    # gate weights packed in bf16 (MXU operands); bias / fc stay f32
    kernel_params = (wih_f.astype(jnp.bfloat16), whh_f.astype(jnp.bfloat16),
                     b_f, w1_p, b1_r, w2_r, b2_r)
    return kernel_params, ref_params


@jax.jit
def forward(x, kparams):
    wih_f, whh_f, b_f, w1, b1, w2, b2 = kparams
    B, T, I = x.shape
    n_next = w2.shape[-1]
    Bp = ((B + 7) // 8) * 8                       # sublane-pad the batch to 8
    x_p = jnp.zeros((Bp, T, I), x.dtype).at[:B, :, :].set(x)
    # time-major flattened input, row index = t*Bp + b
    x_tm = jnp.swapaxes(x_p, 0, 1).reshape(T * Bp, I)

    kernel = functools.partial(seq2seq_att_kernel, T=T, B=Bp)
    out = pl.pallas_call(
        kernel,
        out_shape=jax.ShapeDtypeStruct((Bp, n_next), jnp.float32),
    )(x_tm, wih_f, whh_f, b_f, w1, b1, w2, b2)
    return out[:B]


def reference_forward(x, params):
    """Pure-JAX f32 reference matching the PyTorch module (eval mode)."""
    wih, whh, b, w1, b1, w2, b2 = params
    B, T, I = x.shape
    H = whh.shape[-1]

    def step(carry, x_t):
        h, c = carry

        def gate(g):
            return x_t @ wih[g] + h @ whh[g] + b[g]

        i = jax.nn.sigmoid(gate(0))
        f = jax.nn.sigmoid(gate(1))
        g_ = jnp.tanh(gate(2))
        o = jax.nn.sigmoid(gate(3))
        c = f * c + i * g_
        h = o * jnp.tanh(c)
        return (h, c), h

    x_tm = jnp.swapaxes(x, 0, 1)
    _, hs = lax.scan(step, (jnp.zeros((B, H)), jnp.zeros((B, H))), x_tm)
    hs_bt = jnp.swapaxes(hs, 0, 1)                                   # (B, T, H)
    scores = jnp.einsum('bqh,bkh->bqk', hs_bt, hs_bt) / math.sqrt(H)
    alpha = jax.nn.softmax(scores, axis=-1)
    context = jnp.einsum('bqk,bkh->bqh', alpha, hs_bt).sum(axis=1)   # (B, H)
    z1 = context @ w1 + b1
    a1 = jnp.where(z1 >= 0, z1, NEG_SLOPE * z1)
    z2 = a1 @ w2 + b2
    return jnp.where(z2 >= 0, z2, NEG_SLOPE * z2)


if __name__ == "__main__":
    key = jax.random.PRNGKey(0)
    kx, kp = jax.random.split(key)

    B, T, n_next = 2, 8, 10
    x = jax.random.normal(kx, (B, T, INPUT), dtype=jnp.float32)
    kparams, ref_params = init_params(kp, n_next)

    out = forward(x, kparams)
    out = jax.block_until_ready(out)

    ref = reference_forward(x, ref_params)
    assert out.shape == (B, n_next)
    # kernel uses bf16 MXU operands (f32 accumulate) -> compare at bf16-level tolerance
    assert jnp.allclose(out, ref, rtol=1e-2, atol=1e-2), (out, ref)

    print("KERNEL_OK")
</pallas_src>

<mosaic_0001>
module attributes {stable_mosaic.version = 11 : i64} {
  func.func @seq2seq_att_kernel(%arg0: memref<64x20xf32, #tpu.memory_space<vmem>>, %arg1: memref<20x512xbf16, #tpu.memory_space<vmem>>, %arg2: memref<128x512xbf16, #tpu.memory_space<vmem>>, %arg3: memref<1x512xf32, #tpu.memory_space<vmem>>, %arg4: memref<128x20xf32, #tpu.memory_space<vmem>>, %arg5: memref<1x20xf32, #tpu.memory_space<vmem>>, %arg6: memref<20x10xf32, #tpu.memory_space<vmem>>, %arg7: memref<1x10xf32, #tpu.memory_space<vmem>>, %arg8: memref<8x10xf32, #tpu.memory_space<vmem>>) attributes {dimension_semantics = [], scalar_prefetch = 0 : i64, scratch_operands = 0 : i64, tpu.core_type = #tpu.core_type<tc>} {
    %c0 = arith.constant 0 : index
    %c0_0 = arith.constant 0 : index
    %0 = vector.load %arg0[%c0, %c0_0] : memref<64x20xf32, #tpu.memory_space<vmem>>, vector<64x20xf32>
    %1 = arith.truncf %0 : vector<64x20xf32> to vector<64x20xbf16>
    %c0_1 = arith.constant 0 : index
    %c0_2 = arith.constant 0 : index
    %2 = vector.load %arg1[%c0_1, %c0_2] : memref<20x512xbf16, #tpu.memory_space<vmem>>, vector<20x512xbf16>
    %cst = arith.constant dense<0.000000e+00> : vector<64x512xf32>
    %3 = tpu.matmul %1, %2, %cst {dimension_numbers = #tpu.dot_dimension_numbers<[1], [0], [0], [1], [0, 0, 1, 1], [], []>} : vector<64x20xbf16>, vector<20x512xbf16>, vector<64x512xf32> -> vector<64x512xf32>
    %c0_3 = arith.constant 0 : index
    %c0_4 = arith.constant 0 : index
    %4 = vector.load %arg3[%c0_3, %c0_4] : memref<1x512xf32, #tpu.memory_space<vmem>>, vector<1x512xf32>
    %5 = vector.broadcast %4 : vector<1x512xf32> to vector<64x512xf32>
    %6 = arith.addf %3, %5 : vector<64x512xf32>
    %7 = vector.extract_strided_slice %6 {offsets = [0, 0], sizes = [8, 512], strides = [1, 1]} : vector<64x512xf32> to vector<8x512xf32>
    %8 = vector.extract_strided_slice %6 {offsets = [8, 0], sizes = [8, 512], strides = [1, 1]} : vector<64x512xf32> to vector<8x512xf32>
    %9 = vector.extract_strided_slice %6 {offsets = [16, 0], sizes = [8, 512], strides = [1, 1]} : vector<64x512xf32> to vector<8x512xf32>
    %10 = vector.extract_strided_slice %6 {offsets = [24, 0], sizes = [8, 512], strides = [1, 1]} : vector<64x512xf32> to vector<8x512xf32>
    %11 = vector.extract_strided_slice %6 {offsets = [32, 0], sizes = [8, 512], strides = [1, 1]} : vector<64x512xf32> to vector<8x512xf32>
    %12 = vector.extract_strided_slice %6 {offsets = [40, 0], sizes = [8, 512], strides = [1, 1]} : vector<64x512xf32> to vector<8x512xf32>
    %13 = vector.extract_strided_slice %6 {offsets = [48, 0], sizes = [8, 512], strides = [1, 1]} : vector<64x512xf32> to vector<8x512xf32>
    %14 = vector.extract_strided_slice %6 {offsets = [56, 0], sizes = [8, 512], strides = [1, 1]} : vector<64x512xf32> to vector<8x512xf32>
    %c0_5 = arith.constant 0 : index
    %c0_6 = arith.constant 0 : index
    %15 = vector.load %arg2[%c0_5, %c0_6] : memref<128x512xbf16, #tpu.memory_space<vmem>>, vector<128x512xbf16>
    %cst_7 = arith.constant 0.000000e+00 : f32
    %16 = vector.broadcast %cst_7 : f32 to vector<8x128xf32>
    %cst_8 = arith.constant 0.000000e+00 : f32
    %17 = vector.broadcast %cst_8 : f32 to vector<8x128xf32>
    %18 = arith.truncf %16 : vector<8x128xf32> to vector<8x128xbf16>
    %cst_9 = arith.constant dense<0.000000e+00> : vector<8x512xf32>
    %19 = tpu.matmul %18, %15, %cst_9 {dimension_numbers = #tpu.dot_dimension_numbers<[1], [0], [0], [1], [0, 0, 1, 1], [], []>} : vector<8x128xbf16>, vector<128x512xbf16>, vector<8x512xf32> -> vector<8x512xf32>
    %20 = arith.addf %7, %19 : vector<8x512xf32>
    %21 = vector.extract_strided_slice %20 {offsets = [0, 0], sizes = [8, 128], strides = [1, 1]} : vector<8x512xf32> to vector<8x128xf32>
    %cst_10 = arith.constant 5.000000e-01 : f32
    %22 = vector.broadcast %cst_10 : f32 to vector<8x128xf32>
    %23 = arith.mulf %22, %21 : vector<8x128xf32>
    %24 = math.tanh %23 : vector<8x128xf32>
    %cst_11 = arith.constant 5.000000e-01 : f32
    %25 = vector.broadcast %cst_11 : f32 to vector<8x128xf32>
    %26 = arith.mulf %25, %24 : vector<8x128xf32>
    %cst_12 = arith.constant 5.000000e-01 : f32
    %27 = vector.broadcast %cst_12 : f32 to vector<8x128xf32>
    %28 = arith.addf %26, %27 : vector<8x128xf32>
    %29 = vector.extract_strided_slice %20 {offsets = [0, 128], sizes = [8, 128], strides = [1, 1]} : vector<8x512xf32> to vector<8x128xf32>
    %cst_13 = arith.constant 5.000000e-01 : f32
    %30 = vector.broadcast %cst_13 : f32 to vector<8x128xf32>
    %31 = arith.mulf %30, %29 : vector<8x128xf32>
    %32 = math.tanh %31 : vector<8x128xf32>
    %cst_14 = arith.constant 5.000000e-01 : f32
    %33 = vector.broadcast %cst_14 : f32 to vector<8x128xf32>
    %34 = arith.mulf %33, %32 : vector<8x128xf32>
    %cst_15 = arith.constant 5.000000e-01 : f32
    %35 = vector.broadcast %cst_15 : f32 to vector<8x128xf32>
    %36 = arith.addf %34, %35 : vector<8x128xf32>
    %37 = vector.extract_strided_slice %20 {offsets = [0, 256], sizes = [8, 128], strides = [1, 1]} : vector<8x512xf32> to vector<8x128xf32>
    %38 = math.tanh %37 : vector<8x128xf32>
    %39 = vector.extract_strided_slice %20 {offsets = [0, 384], sizes = [8, 128], strides = [1, 1]} : vector<8x512xf32> to vector<8x128xf32>
    %cst_16 = arith.constant 5.000000e-01 : f32
    %40 = vector.broadcast %cst_16 : f32 to vector<8x128xf32>
    %41 = arith.mulf %40, %39 : vector<8x128xf32>
    %42 = math.tanh %41 : vector<8x128xf32>
    %cst_17 = arith.constant 5.000000e-01 : f32
    %43 = vector.broadcast %cst_17 : f32 to vector<8x128xf32>
    %44 = arith.mulf %43, %42 : vector<8x128xf32>
    %cst_18 = arith.constant 5.000000e-01 : f32
    %45 = vector.broadcast %cst_18 : f32 to vector<8x128xf32>
    %46 = arith.addf %44, %45 : vector<8x128xf32>
    %47 = arith.mulf %36, %17 : vector<8x128xf32>
    %48 = arith.mulf %28, %38 : vector<8x128xf32>
    %49 = arith.addf %47, %48 : vector<8x128xf32>
    %50 = math.tanh %49 : vector<8x128xf32>
    %51 = arith.mulf %46, %50 : vector<8x128xf32>
    %52 = arith.truncf %51 : vector<8x128xf32> to vector<8x128xbf16>
    %cst_19 = arith.constant dense<0.000000e+00> : vector<8x512xf32>
    %53 = tpu.matmul %52, %15, %cst_19 {dimension_numbers = #tpu.dot_dimension_numbers<[1], [0], [0], [1], [0, 0, 1, 1], [], []>} : vector<8x128xbf16>, vector<128x512xbf16>, vector<8x512xf32> -> vector<8x512xf32>
    %54 = arith.addf %8, %53 : vector<8x512xf32>
    %55 = vector.extract_strided_slice %54 {offsets = [0, 0], sizes = [8, 128], strides = [1, 1]} : vector<8x512xf32> to vector<8x128xf32>
    %cst_20 = arith.constant 5.000000e-01 : f32
    %56 = vector.broadcast %cst_20 : f32 to vector<8x128xf32>
    %57 = arith.mulf %56, %55 : vector<8x128xf32>
    %58 = math.tanh %57 : vector<8x128xf32>
    %cst_21 = arith.constant 5.000000e-01 : f32
    %59 = vector.broadcast %cst_21 : f32 to vector<8x128xf32>
    %60 = arith.mulf %59, %58 : vector<8x128xf32>
    %cst_22 = arith.constant 5.000000e-01 : f32
    %61 = vector.broadcast %cst_22 : f32 to vector<8x128xf32>
    %62 = arith.addf %60, %61 : vector<8x128xf32>
    %63 = vector.extract_strided_slice %54 {offsets = [0, 128], sizes = [8, 128], strides = [1, 1]} : vector<8x512xf32> to vector<8x128xf32>
    %cst_23 = arith.constant 5.000000e-01 : f32
    %64 = vector.broadcast %cst_23 : f32 to vector<8x128xf32>
    %65 = arith.mulf %64, %63 : vector<8x128xf32>
    %66 = math.tanh %65 : vector<8x128xf32>
    %cst_24 = arith.constant 5.000000e-01 : f32
    %67 = vector.broadcast %cst_24 : f32 to vector<8x128xf32>
    %68 = arith.mulf %67, %66 : vector<8x128xf32>
    %cst_25 = arith.constant 5.000000e-01 : f32
    %69 = vector.broadcast %cst_25 : f32 to vector<8x128xf32>
    %70 = arith.addf %68, %69 : vector<8x128xf32>
    %71 = vector.extract_strided_slice %54 {offsets = [0, 256], sizes = [8, 128], strides = [1, 1]} : vector<8x512xf32> to vector<8x128xf32>
    %72 = math.tanh %71 : vector<8x128xf32>
    %73 = vector.extract_strided_slice %54 {offsets = [0, 384], sizes = [8, 128], strides = [1, 1]} : vector<8x512xf32> to vector<8x128xf32>
    %cst_26 = arith.constant 5.000000e-01 : f32
    %74 = vector.broadcast %cst_26 : f32 to vector<8x128xf32>
    %75 = arith.mulf %74, %73 : vector<8x128xf32>
    %76 = math.tanh %75 : vector<8x128xf32>
    %cst_27 = arith.constant 5.000000e-01 : f32
    %77 = vector.broadcast %cst_27 : f32 to vector<8x128xf32>
    %78 = arith.mulf %77, %76 : vector<8x128xf32>
    %cst_28 = arith.constant 5.000000e-01 : f32
    %79 = vector.broadcast %cst_28 : f32 to vector<8x128xf32>
    %80 = arith.addf %78, %79 : vector<8x128xf32>
    %81 = arith.mulf %70, %49 : vector<8x128xf32>
    %82 = arith.mulf %62, %72 : vector<8x128xf32>
    %83 = arith.addf %81, %82 : vector<8x128xf32>
    %84 = math.tanh %83 : vector<8x128xf32>
    %85 = arith.mulf %80, %84 : vector<8x128xf32>
    %86 = arith.truncf %85 : vector<8x128xf32> to vector<8x128xbf16>
    %cst_29 = arith.constant dense<0.000000e+00> : vector<8x512xf32>
    %87 = tpu.matmul %86, %15, %cst_29 {dimension_numbers = #tpu.dot_dimension_numbers<[1], [0], [0], [1], [0, 0, 1, 1], [], []>} : vector<8x128xbf16>, vector<128x512xbf16>, vector<8x512xf32> -> vector<8x512xf32>
    %88 = arith.addf %9, %87 : vector<8x512xf32>
    %89 = vector.extract_strided_slice %88 {offsets = [0, 0], sizes = [8, 128], strides = [1, 1]} : vector<8x512xf32> to vector<8x128xf32>
    %cst_30 = arith.constant 5.000000e-01 : f32
    %90 = vector.broadcast %cst_30 : f32 to vector<8x128xf32>
    %91 = arith.mulf %90, %89 : vector<8x128xf32>
    %92 = math.tanh %91 : vector<8x128xf32>
    %cst_31 = arith.constant 5.000000e-01 : f32
    %93 = vector.broadcast %cst_31 : f32 to vector<8x128xf32>
    %94 = arith.mulf %93, %92 : vector<8x128xf32>
    %cst_32 = arith.constant 5.000000e-01 : f32
    %95 = vector.broadcast %cst_32 : f32 to vector<8x128xf32>
    %96 = arith.addf %94, %95 : vector<8x128xf32>
    %97 = vector.extract_strided_slice %88 {offsets = [0, 128], sizes = [8, 128], strides = [1, 1]} : vector<8x512xf32> to vector<8x128xf32>
    %cst_33 = arith.constant 5.000000e-01 : f32
    %98 = vector.broadcast %cst_33 : f32 to vector<8x128xf32>
    %99 = arith.mulf %98, %97 : vector<8x128xf32>
    %100 = math.tanh %99 : vector<8x128xf32>
    %cst_34 = arith.constant 5.000000e-01 : f32
    %101 = vector.broadcast %cst_34 : f32 to vector<8x128xf32>
    %102 = arith.mulf %101, %100 : vector<8x128xf32>
    %cst_35 = arith.constant 5.000000e-01 : f32
    %103 = vector.broadcast %cst_35 : f32 to vector<8x128xf32>
    %104 = arith.addf %102, %103 : vector<8x128xf32>
    %105 = vector.extract_strided_slice %88 {offsets = [0, 256], sizes = [8, 128], strides = [1, 1]} : vector<8x512xf32> to vector<8x128xf32>
    %106 = math.tanh %105 : vector<8x128xf32>
    %107 = vector.extract_strided_slice %88 {offsets = [0, 384], sizes = [8, 128], strides = [1, 1]} : vector<8x512xf32> to vector<8x128xf32>
    %cst_36 = arith.constant 5.000000e-01 : f32
    %108 = vector.broadcast %cst_36 : f32 to vector<8x128xf32>
    %109 = arith.mulf %108, %107 : vector<8x128xf32>
    %110 = math.tanh %109 : vector<8x128xf32>
    %cst_37 = arith.constant 5.000000e-01 : f32
    %111 = vector.broadcast %cst_37 : f32 to vector<8x128xf32>
    %112 = arith.mulf %111, %110 : vector<8x128xf32>
    %cst_38 = arith.constant 5.000000e-01 : f32
    %113 = vector.broadcast %cst_38 : f32 to vector<8x128xf32>
    %114 = arith.addf %112, %113 : vector<8x128xf32>
    %115 = arith.mulf %104, %83 : vector<8x128xf32>
    %116 = arith.mulf %96, %106 : vector<8x128xf32>
    %117 = arith.addf %115, %116 : vector<8x128xf32>
    %118 = math.tanh %117 : vector<8x128xf32>
    %119 = arith.mulf %114, %118 : vector<8x128xf32>
    %120 = arith.truncf %119 : vector<8x128xf32> to vector<8x128xbf16>
    %cst_39 = arith.constant dense<0.000000e+00> : vector<8x512xf32>
    %121 = tpu.matmul %120, %15, %cst_39 {dimension_numbers = #tpu.dot_dimension_numbers<[1], [0], [0], [1], [0, 0, 1, 1], [], []>} : vector<8x128xbf16>, vector<128x512xbf16>, vector<8x512xf32> -> vector<8x512xf32>
    %122 = arith.addf %10, %121 : vector<8x512xf32>
    %123 = vector.extract_strided_slice %122 {offsets = [0, 0], sizes = [8, 128], strides = [1, 1]} : vector<8x512xf32> to vector<8x128xf32>
    %cst_40 = arith.constant 5.000000e-01 : f32
    %124 = vector.broadcast %cst_40 : f32 to vector<8x128xf32>
    %125 = arith.mulf %124, %123 : vector<8x128xf32>
    %126 = math.tanh %125 : vector<8x128xf32>
    %cst_41 = arith.constant 5.000000e-01 : f32
    %127 = vector.broadcast %cst_41 : f32 to vector<8x128xf32>
    %128 = arith.mulf %127, %126 : vector<8x128xf32>
    %cst_42 = arith.constant 5.000000e-01 : f32
    %129 = vector.broadcast %cst_42 : f32 to vector<8x128xf32>
    %130 = arith.addf %128, %129 : vector<8x128xf32>
    %131 = vector.extract_strided_slice %122 {offsets = [0, 128], sizes = [8, 128], strides = [1, 1]} : vector<8x512xf32> to vector<8x128xf32>
    %cst_43 = arith.constant 5.000000e-01 : f32
    %132 = vector.broadcast %cst_43 : f32 to vector<8x128xf32>
    %133 = arith.mulf %132, %131 : vector<8x128xf32>
    %134 = math.tanh %133 : vector<8x128xf32>
    %cst_44 = arith.constant 5.000000e-01 : f32
    %135 = vector.broadcast %cst_44 : f32 to vector<8x128xf32>
    %136 = arith.mulf %135, %134 : vector<8x128xf32>
    %cst_45 = arith.constant 5.000000e-01 : f32
    %137 = vector.broadcast %cst_45 : f32 to vector<8x128xf32>
    %138 = arith.addf %136, %137 : vector<8x128xf32>
    %139 = vector.extract_strided_slice %122 {offsets = [0, 256], sizes = [8, 128], strides = [1, 1]} : vector<8x512xf32> to vector<8x128xf32>
    %140 = math.tanh %139 : vector<8x128xf32>
    %141 = vector.extract_strided_slice %122 {offsets = [0, 384], sizes = [8, 128], strides = [1, 1]} : vector<8x512xf32> to vector<8x128xf32>
    %cst_46 = arith.constant 5.000000e-01 : f32
    %142 = vector.broadcast %cst_46 : f32 to vector<8x128xf32>
    %143 = arith.mulf %142, %141 : vector<8x128xf32>
    %144 = math.tanh %143 : vector<8x128xf32>
    %cst_47 = arith.constant 5.000000e-01 : f32
    %145 = vector.broadcast %cst_47 : f32 to vector<8x128xf32>
    %146 = arith.mulf %145, %144 : vector<8x128xf32>
    %cst_48 = arith.constant 5.000000e-01 : f32
    %147 = vector.broadcast %cst_48 : f32 to vector<8x128xf32>
    %148 = arith.addf %146, %147 : vector<8x128xf32>
    %149 = arith.mulf %138, %117 : vector<8x128xf32>
    %150 = arith.mulf %130, %140 : vector<8x128xf32>
    %151 = arith.addf %149, %150 : vector<8x128xf32>
    %152 = math.tanh %151 : vector<8x128xf32>
    %153 = arith.mulf %148, %152 : vector<8x128xf32>
    %154 = arith.truncf %153 : vector<8x128xf32> to vector<8x128xbf16>
    %cst_49 = arith.constant dense<0.000000e+00> : vector<8x512xf32>
    %155 = tpu.matmul %154, %15, %cst_49 {dimension_numbers = #tpu.dot_dimension_numbers<[1], [0], [0], [1], [0, 0, 1, 1], [], []>} : vector<8x128xbf16>, vector<128x512xbf16>, vector<8x512xf32> -> vector<8x512xf32>
    %156 = arith.addf %11, %155 : vector<8x512xf32>
    %157 = vector.extract_strided_slice %156 {offsets = [0, 0], sizes = [8, 128], strides = [1, 1]} : vector<8x512xf32> to vector<8x128xf32>
    %cst_50 = arith.constant 5.000000e-01 : f32
    %158 = vector.broadcast %cst_50 : f32 to vector<8x128xf32>
    %159 = arith.mulf %158, %157 : vector<8x128xf32>
    %160 = math.tanh %159 : vector<8x128xf32>
    %cst_51 = arith.constant 5.000000e-01 : f32
    %161 = vector.broadcast %cst_51 : f32 to vector<8x128xf32>
    %162 = arith.mulf %161, %160 : vector<8x128xf32>
    %cst_52 = arith.constant 5.000000e-01 : f32
    %163 = vector.broadcast %cst_52 : f32 to vector<8x128xf32>
    %164 = arith.addf %162, %163 : vector<8x128xf32>
    %165 = vector.extract_strided_slice %156 {offsets = [0, 128], sizes = [8, 128], strides = [1, 1]} : vector<8x512xf32> to vector<8x128xf32>
    %cst_53 = arith.constant 5.000000e-01 : f32
    %166 = vector.broadcast %cst_53 : f32 to vector<8x128xf32>
    %167 = arith.mulf %166, %165 : vector<8x128xf32>
    %168 = math.tanh %167 : vector<8x128xf32>
    %cst_54 = arith.constant 5.000000e-01 : f32
    %169 = vector.broadcast %cst_54 : f32 to vector<8x128xf32>
    %170 = arith.mulf %169, %168 : vector<8x128xf32>
    %cst_55 = arith.constant 5.000000e-01 : f32
    %171 = vector.broadcast %cst_55 : f32 to vector<8x128xf32>
    %172 = arith.addf %170, %171 : vector<8x128xf32>
    %173 = vector.extract_strided_slice %156 {offsets = [0, 256], sizes = [8, 128], strides = [1, 1]} : vector<8x512xf32> to vector<8x128xf32>
    %174 = math.tanh %173 : vector<8x128xf32>
    %175 = vector.extract_strided_slice %156 {offsets = [0, 384], sizes = [8, 128], strides = [1, 1]} : vector<8x512xf32> to vector<8x128xf32>
    %cst_56 = arith.constant 5.000000e-01 : f32
    %176 = vector.broadcast %cst_56 : f32 to vector<8x128xf32>
    %177 = arith.mulf %176, %175 : vector<8x128xf32>
    %178 = math.tanh %177 : vector<8x128xf32>
    %cst_57 = arith.constant 5.000000e-01 : f32
    %179 = vector.broadcast %cst_57 : f32 to vector<8x128xf32>
    %180 = arith.mulf %179, %178 : vector<8x128xf32>
    %cst_58 = arith.constant 5.000000e-01 : f32
    %181 = vector.broadcast %cst_58 : f32 to vector<8x128xf32>
    %182 = arith.addf %180, %181 : vector<8x128xf32>
    %183 = arith.mulf %172, %151 : vector<8x128xf32>
    %184 = arith.mulf %164, %174 : vector<8x128xf32>
    %185 = arith.addf %183, %184 : vector<8x128xf32>
    %186 = math.tanh %185 : vector<8x128xf32>
    %187 = arith.mulf %182, %186 : vector<8x128xf32>
    %188 = arith.truncf %187 : vector<8x128xf32> to vector<8x128xbf16>
    %cst_59 = arith.constant dense<0.000000e+00> : vector<8x512xf32>
    %189 = tpu.matmul %188, %15, %cst_59 {dimension_numbers = #tpu.dot_dimension_numbers<[1], [0], [0], [1], [0, 0, 1, 1], [], []>} : vector<8x128xbf16>, vector<128x512xbf16>, vector<8x512xf32> -> vector<8x512xf32>
    %190 = arith.addf %12, %189 : vector<8x512xf32>
    %191 = vector.extract_strided_slice %190 {offsets = [0, 0], sizes = [8, 128], strides = [1, 1]} : vector<8x512xf32> to vector<8x128xf32>
    %cst_60 = arith.constant 5.000000e-01 : f32
    %192 = vector.broadcast %cst_60 : f32 to vector<8x128xf32>
    %193 = arith.mulf %192, %191 : vector<8x128xf32>
    %194 = math.tanh %193 : vector<8x128xf32>
    %cst_61 = arith.constant 5.000000e-01 : f32
    %195 = vector.broadcast %cst_61 : f32 to vector<8x128xf32>
    %196 = arith.mulf %195, %194 : vector<8x128xf32>
    %cst_62 = arith.constant 5.000000e-01 : f32
    %197 = vector.broadcast %cst_62 : f32 to vector<8x128xf32>
    %198 = arith.addf %196, %197 : vector<8x128xf32>
    %199 = vector.extract_strided_slice %190 {offsets = [0, 128], sizes = [8, 128], strides = [1, 1]} : vector<8x512xf32> to vector<8x128xf32>
    %cst_63 = arith.constant 5.000000e-01 : f32
    %200 = vector.broadcast %cst_63 : f32 to vector<8x128xf32>
    %201 = arith.mulf %200, %199 : vector<8x128xf32>
    %202 = math.tanh %201 : vector<8x128xf32>
    %cst_64 = arith.constant 5.000000e-01 : f32
    %203 = vector.broadcast %cst_64 : f32 to vector<8x128xf32>
    %204 = arith.mulf %203, %202 : vector<8x128xf32>
    %cst_65 = arith.constant 5.000000e-01 : f32
    %205 = vector.broadcast %cst_65 : f32 to vector<8x128xf32>
    %206 = arith.addf %204, %205 : vector<8x128xf32>
    %207 = vector.extract_strided_slice %190 {offsets = [0, 256], sizes = [8, 128], strides = [1, 1]} : vector<8x512xf32> to vector<8x128xf32>
    %208 = math.tanh %207 : vector<8x128xf32>
    %209 = vector.extract_strided_slice %190 {offsets = [0, 384], sizes = [8, 128], strides = [1, 1]} : vector<8x512xf32> to vector<8x128xf32>
    %cst_66 = arith.constant 5.000000e-01 : f32
    %210 = vector.broadcast %cst_66 : f32 to vector<8x128xf32>
    %211 = arith.mulf %210, %209 : vector<8x128xf32>
    %212 = math.tanh %211 : vector<8x128xf32>
    %cst_67 = arith.constant 5.000000e-01 : f32
    %213 = vector.broadcast %cst_67 : f32 to vector<8x128xf32>
    %214 = arith.mulf %213, %212 : vector<8x128xf32>
    %cst_68 = arith.constant 5.000000e-01 : f32
    %215 = vector.broadcast %cst_68 : f32 to vector<8x128xf32>
    %216 = arith.addf %214, %215 : vector<8x128xf32>
    %217 = arith.mulf %206, %185 : vector<8x128xf32>
    %218 = arith.mulf %198, %208 : vector<8x128xf32>
    %219 = arith.addf %217, %218 : vector<8x128xf32>
    %220 = math.tanh %219 : vector<8x128xf32>
    %221 = arith.mulf %216, %220 : vector<8x128xf32>
    %222 = arith.truncf %221 : vector<8x128xf32> to vector<8x128xbf16>
    %cst_69 = arith.constant dense<0.000000e+00> : vector<8x512xf32>
    %223 = tpu.matmul %222, %15, %cst_69 {dimension_numbers = #tpu.dot_dimension_numbers<[1], [0], [0], [1], [0, 0, 1, 1], [], []>} : vector<8x128xbf16>, vector<128x512xbf16>, vector<8x512xf32> -> vector<8x512xf32>
    %224 = arith.addf %13, %223 : vector<8x512xf32>
    %225 = vector.extract_strided_slice %224 {offsets = [0, 0], sizes = [8, 128], strides = [1, 1]} : vector<8x512xf32> to vector<8x128xf32>
    %cst_70 = arith.constant 5.000000e-01 : f32
    %226 = vector.broadcast %cst_70 : f32 to vector<8x128xf32>
    %227 = arith.mulf %226, %225 : vector<8x128xf32>
    %228 = math.tanh %227 : vector<8x128xf32>
    %cst_71 = arith.constant 5.000000e-01 : f32
    %229 = vector.broadcast %cst_71 : f32 to vector<8x128xf32>
    %230 = arith.mulf %229, %228 : vector<8x128xf32>
    %cst_72 = arith.constant 5.000000e-01 : f32
    %231 = vector.broadcast %cst_72 : f32 to vector<8x128xf32>
    %232 = arith.addf %230, %231 : vector<8x128xf32>
    %233 = vector.extract_strided_slice %224 {offsets = [0, 128], sizes = [8, 128], strides = [1, 1]} : vector<8x512xf32> to vector<8x128xf32>
    %cst_73 = arith.constant 5.000000e-01 : f32
    %234 = vector.broadcast %cst_73 : f32 to vector<8x128xf32>
    %235 = arith.mulf %234, %233 : vector<8x128xf32>
    %236 = math.tanh %235 : vector<8x128xf32>
    %cst_74 = arith.constant 5.000000e-01 : f32
    %237 = vector.broadcast %cst_74 : f32 to vector<8x128xf32>
    %238 = arith.mulf %237, %236 : vector<8x128xf32>
    %cst_75 = arith.constant 5.000000e-01 : f32
    %239 = vector.broadcast %cst_75 : f32 to vector<8x128xf32>
    %240 = arith.addf %238, %239 : vector<8x128xf32>
    %241 = vector.extract_strided_slice %224 {offsets = [0, 256], sizes = [8, 128], strides = [1, 1]} : vector<8x512xf32> to vector<8x128xf32>
    %242 = math.tanh %241 : vector<8x128xf32>
    %243 = vector.extract_strided_slice %224 {offsets = [0, 384], sizes = [8, 128], strides = [1, 1]} : vector<8x512xf32> to vector<8x128xf32>
    %cst_76 = arith.constant 5.000000e-01 : f32
    %244 = vector.broadcast %cst_76 : f32 to vector<8x128xf32>
    %245 = arith.mulf %244, %243 : vector<8x128xf32>
    %246 = math.tanh %245 : vector<8x128xf32>
    %cst_77 = arith.constant 5.000000e-01 : f32
    %247 = vector.broadcast %cst_77 : f32 to vector<8x128xf32>
    %248 = arith.mulf %247, %246 : vector<8x128xf32>
    %cst_78 = arith.constant 5.000000e-01 : f32
    %249 = vector.broadcast %cst_78 : f32 to vector<8x128xf32>
    %250 = arith.addf %248, %249 : vector<8x128xf32>
    %251 = arith.mulf %240, %219 : vector<8x128xf32>
    %252 = arith.mulf %232, %242 : vector<8x128xf32>
    %253 = arith.addf %251, %252 : vector<8x128xf32>
    %254 = math.tanh %253 : vector<8x128xf32>
    %255 = arith.mulf %250, %254 : vector<8x128xf32>
    %256 = arith.truncf %255 : vector<8x128xf32> to vector<8x128xbf16>
    %cst_79 = arith.constant dense<0.000000e+00> : vector<8x512xf32>
    %257 = tpu.matmul %256, %15, %cst_79 {dimension_numbers = #tpu.dot_dimension_numbers<[1], [0], [0], [1], [0, 0, 1, 1], [], []>} : vector<8x128xbf16>, vector<128x512xbf16>, vector<8x512xf32> -> vector<8x512xf32>
    %258 = arith.addf %14, %257 : vector<8x512xf32>
    %259 = vector.extract_strided_slice %258 {offsets = [0, 0], sizes = [8, 128], strides = [1, 1]} : vector<8x512xf32> to vector<8x128xf32>
    %cst_80 = arith.constant 5.000000e-01 : f32
    %260 = vector.broadcast %cst_80 : f32 to vector<8x128xf32>
    %261 = arith.mulf %260, %259 : vector<8x128xf32>
    %262 = math.tanh %261 : vector<8x128xf32>
    %cst_81 = arith.constant 5.000000e-01 : f32
    %263 = vector.broadcast %cst_81 : f32 to vector<8x128xf32>
    %264 = arith.mulf %263, %262 : vector<8x128xf32>
    %cst_82 = arith.constant 5.000000e-01 : f32
    %265 = vector.broadcast %cst_82 : f32 to vector<8x128xf32>
    %266 = arith.addf %264, %265 : vector<8x128xf32>
    %267 = vector.extract_strided_slice %258 {offsets = [0, 128], sizes = [8, 128], strides = [1, 1]} : vector<8x512xf32> to vector<8x128xf32>
    %cst_83 = arith.constant 5.000000e-01 : f32
    %268 = vector.broadcast %cst_83 : f32 to vector<8x128xf32>
    %269 = arith.mulf %268, %267 : vector<8x128xf32>
    %270 = math.tanh %269 : vector<8x128xf32>
    %cst_84 = arith.constant 5.000000e-01 : f32
    %271 = vector.broadcast %cst_84 : f32 to vector<8x128xf32>
    %272 = arith.mulf %271, %270 : vector<8x128xf32>
    %cst_85 = arith.constant 5.000000e-01 : f32
    %273 = vector.broadcast %cst_85 : f32 to vector<8x128xf32>
    %274 = arith.addf %272, %273 : vector<8x128xf32>
    %275 = vector.extract_strided_slice %258 {offsets = [0, 256], sizes = [8, 128], strides = [1, 1]} : vector<8x512xf32> to vector<8x128xf32>
    %276 = math.tanh %275 : vector<8x128xf32>
    %277 = vector.extract_strided_slice %258 {offsets = [0, 384], sizes = [8, 128], strides = [1, 1]} : vector<8x512xf32> to vector<8x128xf32>
    %cst_86 = arith.constant 5.000000e-01 : f32
    %278 = vector.broadcast %cst_86 : f32 to vector<8x128xf32>
    %279 = arith.mulf %278, %277 : vector<8x128xf32>
    %280 = math.tanh %279 : vector<8x128xf32>
    %cst_87 = arith.constant 5.000000e-01 : f32
    %281 = vector.broadcast %cst_87 : f32 to vector<8x128xf32>
    %282 = arith.mulf %281, %280 : vector<8x128xf32>
    %cst_88 = arith.constant 5.000000e-01 : f32
    %283 = vector.broadcast %cst_88 : f32 to vector<8x128xf32>
    %284 = arith.addf %282, %283 : vector<8x128xf32>
    %285 = arith.mulf %274, %253 : vector<8x128xf32>
    %286 = arith.mulf %266, %276 : vector<8x128xf32>
    %287 = arith.addf %285, %286 : vector<8x128xf32>
    %288 = math.tanh %287 : vector<8x128xf32>
    %289 = arith.mulf %284, %288 : vector<8x128xf32>
    %290 = tpu.concatenate %51, %85, %119, %153, %187, %221, %255, %289 in 0 : vector<8x128xf32>, vector<8x128xf32>, vector<8x128xf32>, vector<8x128xf32>, vector<8x128xf32>, vector<8x128xf32>, vector<8x128xf32>, vector<8x128xf32> -> vector<64x128xf32>
    %cst_89 = arith.constant dense<0.000000e+00> : vector<64x64xf32>
    %291 = tpu.matmul %290, %290, %cst_89 {dimension_numbers = #tpu.dot_dimension_numbers<[1], [1], [0], [0], [0, 0, 1, 0], [], []>} : vector<64x128xf32>, vector<64x128xf32>, vector<64x64xf32> -> vector<64x64xf32>
    %cst_90 = arith.constant 0.158113882 : f32
    %292 = vector.broadcast %cst_90 : f32 to vector<64x64xf32>
    %293 = arith.mulf %291, %292 : vector<64x64xf32>
    %294 = tpu.iota {dimensions = array<i32: 0>} : vector<64x64xi32>
    %c8_i32 = arith.constant 8 : i32
    %c0_i32 = arith.constant 0 : i32
    %295 = arith.cmpi eq, %c8_i32, %c0_i32 : i32
    %c1_i32 = arith.constant 1 : i32
    %296 = arith.select %295, %c1_i32, %c8_i32 : i32
    %297 = vector.broadcast %296 : i32 to vector<64x64xi32>
    %298 = arith.remsi %294, %297 : vector<64x64xi32>
    %c0_i32_91 = arith.constant 0 : i32
    %299 = vector.broadcast %c0_i32_91 : i32 to vector<64x64xi32>
    %300 = arith.cmpi ne, %298, %299 : vector<64x64xi32>
    %c0_i32_92 = arith.constant 0 : i32
    %301 = vector.broadcast %c0_i32_92 : i32 to vector<64x64xi32>
    %302 = arith.cmpi slt, %298, %301 : vector<64x64xi32>
    %c0_i32_93 = arith.constant 0 : i32
    %303 = arith.cmpi slt, %296, %c0_i32_93 : i32
    %304 = vector.broadcast %303 : i1 to vector<64x64xi1>
    %305 = vector.broadcast %304 : vector<64x64xi1> to vector<64x64xi1>
    %306 = arith.xori %302, %305 : vector<64x64xi1>
    %307 = arith.andi %306, %300 : vector<64x64xi1>
    %308 = vector.broadcast %296 : i32 to vector<64x64xi32>
    %309 = arith.addi %298, %308 : vector<64x64xi32>
    %310 = arith.select %307, %309, %298 : vector<64x64xi1>, vector<64x64xi32>
    %311 = tpu.iota {dimensions = array<i32: 1>} : vector<64x64xi32>
    %c8_i32_94 = arith.constant 8 : i32
    %c0_i32_95 = arith.constant 0 : i32
    %312 = arith.cmpi eq, %c8_i32_94, %c0_i32_95 : i32
    %c1_i32_96 = arith.constant 1 : i32
    %313 = arith.select %312, %c1_i32_96, %c8_i32_94 : i32
    %314 = vector.broadcast %313 : i32 to vector<64x64xi32>
    %315 = arith.remsi %311, %314 : vector<64x64xi32>
    %c0_i32_97 = arith.constant 0 : i32
    %316 = vector.broadcast %c0_i32_97 : i32 to vector<64x64xi32>
    %317 = arith.cmpi ne, %315, %316 : vector<64x64xi32>
    %c0_i32_98 = arith.constant 0 : i32
    %318 = vector.broadcast %c0_i32_98 : i32 to vector<64x64xi32>
    %319 = arith.cmpi slt, %315, %318 : vector<64x64xi32>
    %c0_i32_99 = arith.constant 0 : i32
    %320 = arith.cmpi slt, %313, %c0_i32_99 : i32
    %321 = vector.broadcast %320 : i1 to vector<64x64xi1>
    %322 = vector.broadcast %321 : vector<64x64xi1> to vector<64x64xi1>
    %323 = arith.xori %319, %322 : vector<64x64xi1>
    %324 = arith.andi %323, %317 : vector<64x64xi1>
    %325 = vector.broadcast %313 : i32 to vector<64x64xi32>
    %326 = arith.addi %315, %325 : vector<64x64xi32>
    %327 = arith.select %324, %326, %315 : vector<64x64xi1>, vector<64x64xi32>
    %328 = arith.cmpi eq, %310, %327 : vector<64x64xi32>
    %cst_100 = arith.constant -1.000000e+30 : f32
    %329 = vector.broadcast %cst_100 : f32 to vector<64x64xf32>
    %330 = arith.select %328, %293, %329 : vector<64x64xi1>, vector<64x64xf32>
    %cst_101 = arith.constant dense<0xFF800000> : vector<64xf32>
    %331 = vector.multi_reduction <maximumf>, %330, %cst_101 [1] : vector<64x64xf32> to vector<64xf32>
    %332 = vector.shape_cast %331 : vector<64xf32> to vector<64x1xf32>
    %333 = vector.broadcast %332 : vector<64x1xf32> to vector<64x64xf32>
    %334 = arith.subf %330, %333 : vector<64x64xf32>
    %335 = math.exp %334 : vector<64x64xf32>
    %cst_102 = arith.constant dense<0.000000e+00> : vector<64xf32>
    %336 = vector.multi_reduction <add>, %335, %cst_102 [1] : vector<64x64xf32> to vector<64xf32>
    %337 = vector.shape_cast %336 : vector<64xf32> to vector<64x1xf32>
    %338 = tpu.reciprocal %337 {approx = true} : vector<64x1xf32> -> vector<64x1xf32>
    %339 = vector.broadcast %338 : vector<64x1xf32> to vector<64x64xf32>
    %340 = arith.mulf %335, %339 : vector<64x64xf32>
    %341 = tpu.iota {dimensions = array<i32: 1>} : vector<8x64xi32>
    %c8_i32_103 = arith.constant 8 : i32
    %c0_i32_104 = arith.constant 0 : i32
    %342 = arith.cmpi eq, %c8_i32_103, %c0_i32_104 : i32
    %c1_i32_105 = arith.constant 1 : i32
    %343 = arith.select %342, %c1_i32_105, %c8_i32_103 : i32
    %344 = vector.broadcast %343 : i32 to vector<8x64xi32>
    %345 = arith.remsi %341, %344 : vector<8x64xi32>
    %c0_i32_106 = arith.constant 0 : i32
    %346 = vector.broadcast %c0_i32_106 : i32 to vector<8x64xi32>
    %347 = arith.cmpi ne, %345, %346 : vector<8x64xi32>
    %c0_i32_107 = arith.constant 0 : i32
    %348 = vector.broadcast %c0_i32_107 : i32 to vector<8x64xi32>
    %349 = arith.cmpi slt, %345, %348 : vector<8x64xi32>
    %c0_i32_108 = arith.constant 0 : i32
    %350 = arith.cmpi slt, %343, %c0_i32_108 : i32
    %351 = vector.broadcast %350 : i1 to vector<8x64xi1>
    %352 = vector.broadcast %351 : vector<8x64xi1> to vector<8x64xi1>
    %353 = arith.xori %349, %352 : vector<8x64xi1>
    %354 = arith.andi %353, %347 : vector<8x64xi1>
    %355 = vector.broadcast %343 : i32 to vector<8x64xi32>
    %356 = arith.addi %345, %355 : vector<8x64xi32>
    %357 = arith.select %354, %356, %345 : vector<8x64xi1>, vector<8x64xi32>
    %358 = tpu.iota {dimensions = array<i32: 0>} : vector<8x64xi32>
    %359 = arith.cmpi eq, %357, %358 : vector<8x64xi32>
    %360 = arith.extui %359 : vector<8x64xi1> to vector<8x64xi32>
    %361 = arith.sitofp %360 : vector<8x64xi32> to vector<8x64xf32>
    %cst_109 = arith.constant dense<0.000000e+00> : vector<8x64xf32>
    %362 = tpu.matmul %361, %340, %cst_109 {dimension_numbers = #tpu.dot_dimension_numbers<[1], [0], [0], [1], [0, 0, 1, 1], [], []>} : vector<8x64xf32>, vector<64x64xf32>, vector<8x64xf32> -> vector<8x64xf32>
    %cst_110 = arith.constant dense<0.000000e+00> : vector<8x128xf32>
    %363 = tpu.matmul %362, %290, %cst_110 {dimension_numbers = #tpu.dot_dimension_numbers<[1], [0], [0], [1], [0, 0, 1, 1], [], []>} : vector<8x64xf32>, vector<64x128xf32>, vector<8x128xf32> -> vector<8x128xf32>
    %c0_111 = arith.constant 0 : index
    %c0_112 = arith.constant 0 : index
    %364 = vector.load %arg4[%c0_111, %c0_112] : memref<128x20xf32, #tpu.memory_space<vmem>>, vector<128x20xf32>
    %cst_113 = arith.constant dense<0.000000e+00> : vector<8x20xf32>
    %365 = tpu.matmul %363, %364, %cst_113 {dimension_numbers = #tpu.dot_dimension_numbers<[1], [0], [0], [1], [0, 0, 1, 1], [], []>} : vector<8x128xf32>, vector<128x20xf32>, vector<8x20xf32> -> vector<8x20xf32>
    %c0_114 = arith.constant 0 : index
    %c0_115 = arith.constant 0 : index
    %366 = vector.load %arg5[%c0_114, %c0_115] : memref<1x20xf32, #tpu.memory_space<vmem>>, vector<1x20xf32>
    %367 = vector.broadcast %366 : vector<1x20xf32> to vector<8x20xf32>
    %368 = arith.addf %365, %367 : vector<8x20xf32>
    %cst_116 = arith.constant 0.000000e+00 : f32
    %369 = vector.broadcast %cst_116 : f32 to vector<8x20xf32>
    %370 = arith.cmpf oge, %368, %369 : vector<8x20xf32>
    %cst_117 = arith.constant 0.00999999977 : f32
    %371 = vector.broadcast %cst_117 : f32 to vector<8x20xf32>
    %372 = arith.mulf %371, %368 : vector<8x20xf32>
    %373 = arith.select %370, %368, %372 : vector<8x20xi1>, vector<8x20xf32>
    %c0_118 = arith.constant 0 : index
    %c0_119 = arith.constant 0 : index
    %374 = vector.load %arg6[%c0_118, %c0_119] : memref<20x10xf32, #tpu.memory_space<vmem>>, vector<20x10xf32>
    %cst_120 = arith.constant dense<0.000000e+00> : vector<8x10xf32>
    %375 = tpu.matmul %373, %374, %cst_120 {dimension_numbers = #tpu.dot_dimension_numbers<[1], [0], [0], [1], [0, 0, 1, 1], [], []>} : vector<8x20xf32>, vector<20x10xf32>, vector<8x10xf32> -> vector<8x10xf32>
    %c0_121 = arith.constant 0 : index
    %c0_122 = arith.constant 0 : index
    %376 = vector.load %arg7[%c0_121, %c0_122] : memref<1x10xf32, #tpu.memory_space<vmem>>, vector<1x10xf32>
    %377 = vector.broadcast %376 : vector<1x10xf32> to vector<8x10xf32>
    %378 = arith.addf %375, %377 : vector<8x10xf32>
    %cst_123 = arith.constant 0.000000e+00 : f32
    %379 = vector.broadcast %cst_123 : f32 to vector<8x10xf32>
    %380 = arith.cmpf oge, %378, %379 : vector<8x10xf32>
    %cst_124 = arith.constant 0.00999999977 : f32
    %381 = vector.broadcast %cst_124 : f32 to vector<8x10xf32>
    %382 = arith.mulf %381, %378 : vector<8x10xf32>
    %383 = arith.select %380, %378, %382 : vector<8x10xi1>, vector<8x10xf32>
    %c0_125 = arith.constant 0 : index
    %c0_126 = arith.constant 0 : index
    %384 = vector.load %arg8[%c0_125, %c0_126] : memref<8x10xf32, #tpu.memory_space<vmem>>, vector<8x10xf32>
    tpu.vector_store %arg8[%c0_125, %c0_126], %383 {strides = array<i32>} : memref<8x10xf32, #tpu.memory_space<vmem>>, vector<8x10xf32>,
    return
  }
}

</mosaic_0001>

<llo_original>
// kernel: forward.1
$region0: #{forward.1}
  #allocation0 [shape = 'u32[]', space=smem, size = 0x4, offset = 0x4, fixed_abs, tag = 'smem constant byte address 0x4 - core index']
  #allocation1 [shape = 'u32[72,128]{1,0:T(1,128)}', space=vmem, size = 0x9000, scoped, tag = 'internal scratch']
  %s0 = inlined_call_operand.vmem [shape: f32[64,20], index: 0, kind: input, shape index: {}]
  %s1 = inlined_call_operand.vmem [shape: bf16[20,512], index: 1, kind: input, shape index: {}]
  %s2 = inlined_call_operand.vmem [shape: bf16[128,512], index: 2, kind: input, shape index: {}]
  %s3 = inlined_call_operand.vmem [shape: f32[1,512], index: 3, kind: input, shape index: {}]
  %s4 = inlined_call_operand.vmem [shape: f32[128,20], index: 4, kind: input, shape index: {}]
  %s5 = inlined_call_operand.vmem [shape: f32[1,20], index: 5, kind: input, shape index: {}]
  %s6 = inlined_call_operand.vmem [shape: f32[20,10], index: 6, kind: input, shape index: {}]
  %s7 = inlined_call_operand.vmem [shape: f32[1,10], index: 7, kind: input, shape index: {}]
  %s8 = inlined_call_operand.vmem [shape: f32[8,10], index: 8, kind: output, shape index: {}]
  %s9 = sld [smem:[#allocation0]]
  $region42: #{forward.1} parent=0
    _
  %s11 = ssub.s32 1, %s9
  %s12 = scalar_select 0, %s11, %s9
  // Predicated region
  $region2: #{forward.1} parent=0 // pred_check
    _
  $region3: #{forward.1} parent=0 // pred_check_branch
    %14 = sbr.rel (0) target = $region5
  $region4: #{forward.1} parent=0 // pred_region
    _
  $region5: #{forward.1} parent=0 // pred_fallthru
    _
  // Predicated region
  $region6: #{forward.1} parent=0 // pred_check
    _
  $region7: #{forward.1} parent=0 // pred_check_branch
    %16 = sbr.rel (0) target = $region9
  $region8: #{forward.1} parent=0 // pred_region
    _
  $region9: #{forward.1} parent=0 // pred_fallthru
    _
  // Predicated region
  $region10: #{forward.1} parent=0 // pred_check
    _
  $region11: #{forward.1} parent=0 // pred_check_branch
    %18 = sbr.rel (0) target = $region13
  $region12: #{forward.1} parent=0 // pred_region
    _
  $region13: #{forward.1} parent=0 // pred_fallthru
    _
  // Predicated region
  $region14: #{forward.1} parent=0 // pred_check
    _
  $region15: #{forward.1} parent=0 // pred_check_branch
    %20 = sbr.rel (0) target = $region17
  $region16: #{forward.1} parent=0 // pred_region
    _
  $region17: #{forward.1} parent=0 // pred_fallthru
    _
  // Predicated region
  $region18: #{forward.1} parent=0 // pred_check
    _
  $region19: #{forward.1} parent=0 // pred_check_branch
    %22 = sbr.rel (0) target = $region21
  $region20: #{forward.1} parent=0 // pred_region
    _
  $region21: #{forward.1} parent=0 // pred_fallthru
    _
  // Predicated region
  $region22: #{forward.1} parent=0 // pred_check
    _
  $region23: #{forward.1} parent=0 // pred_check_branch
    %24 = sbr.rel (0) target = $region25
  $region24: #{forward.1} parent=0 // pred_region
    _
  $region25: #{forward.1} parent=0 // pred_fallthru
    _
  // Predicated region
  $region26: #{forward.1} parent=0 // pred_check
    _
  $region27: #{forward.1} parent=0 // pred_check_branch
    %26 = sbr.rel (0) target = $region29
  $region28: #{forward.1} parent=0 // pred_region
    _
  $region29: #{forward.1} parent=0 // pred_fallthru
    _
  // Predicated region
  $region30: #{forward.1} parent=0 // pred_check
    _
  $region31: #{forward.1} parent=0 // pred_check_branch
    %28 = sbr.rel (0) target = $region33
  $region32: #{forward.1} parent=0 // pred_region
    _
  $region33: #{forward.1} parent=0 // pred_fallthru
    _
  %v30 = vld [vmem:[%s0] sm:$0xff]
  %v31 = vld [vmem:[%s0 + $0x8] sm:$0xff]
  %v32 = vld [vmem:[%s0 + $0x10] sm:$0xff]
  %v33 = vld [vmem:[%s0 + $0x18] sm:$0xff]
  %v34 = vld [vmem:[%s0 + $0x20] sm:$0xff]
  %v35 = vld [vmem:[%s0 + $0x28] sm:$0xff]
  %v36 = vld [vmem:[%s0 + $0x30] sm:$0xff]
  %v37 = vld [vmem:[%s0 + $0x38] sm:$0xff]
  %v38 = vpack.c.bf16 %v31, %v30
  %v39 = vpack.c.bf16 %v33, %v32
  %v40 = vpack.c.bf16 %v35, %v34
  %v41 = vpack.c.bf16 %v37, %v36
  %v42 = vld [vmem:[%s1] sm:$0xff]
  %v43 = vld [vmem:[%s1 + $0x8] sm:$0xff]
  %v44 = vld [vmem:[%s1 + $0x10] sm:$0xff]
  %v45 = vld [vmem:[%s1 + $0x18] sm:$0xff]
  %v46 = vld [vmem:[%s1 + $0x20] sm:$0x33]
  %v47 = vld [vmem:[%s1 + $0x28] sm:$0x33]
  %v48 = vld [vmem:[%s3] sm:$0xf]
  %v50 = vperm.slane %v48, 0
  %v51 = vperm.slane %v48, 1
  %v52 = vperm.slane %v48, 2
  %v53 = vperm.slane %v48, 3
  %v64 = vunpack.c.l.b16 %v42
  %v65 = vunpack.c.h.b16 %v42
  %v66 = vunpack.c.l.b16 %v43
  %v67 = vunpack.c.h.b16 %v43
  %v68 = vunpack.c.l.b16 %v44
  %v69 = vunpack.c.h.b16 %v44
  %v70 = vunpack.c.l.b16 %v45
  %v71 = vunpack.c.h.b16 %v45
  %v72 = vunpack.c.l.b16 %v46
  %v73 = vunpack.c.h.b16 %v46
  %v74 = vunpack.c.l.b16 %v47
  %v75 = vunpack.c.h.b16 %v47
  %v76 = vpack.c.b16 %v68, %v64
  %v77 = vpack.c.b16 %v69, %v65
  %v78 = vpack.c.b16 %v70, %v66
  %v79 = vpack.c.b16 %v71, %v67
  %v80 = vpack.c.b16 %v72, %v72
  %v81 = vpack.c.b16 %v73, %v73
  %v82 = vpack.c.b16 %v74, %v74
  %v83 = vpack.c.b16 %v75, %v75
  %vm88 = vcmask 162816
  %v90 = vsel %vm88, %v38, 0
  %v93 = vsel %vm88, %v39, 0
  %v96 = vsel %vm88, %v40, 0
  %v99 = vsel %vm88, %v41, 0
  %vm101 = vcmask 1041408
  %v103 = vsel %vm101, %v80, 0
  %v106 = vsel %vm101, %v81, 0
  %v109 = vsel %vm101, %v82, 0
  %v112 = vsel %vm101, %v83, 0
  %114 = vmatpush.bf16.msra.mxu0 0
  %115 = vmatpush.bf16.msra.mxu0 0
  %116 = vmatpush.bf16.msra.mxu0 0
  %117 = vmatpush.bf16.msra.mxu0 0
  %118 = vmatpush.bf16.msra.mxu0 0
  %119 = vmatpush.bf16.msra.mxu0 0
  %120 = vmatpush.bf16.msra.mxu0 %v103
  %121 = vmatpush.bf16.msra.mxu0 %v76
  %122 = vmatmul.bf16.gmra.mxu0 %v90
  %v123 = vpop.f32.mrf.mxu0
  %v124 = vadd.f32 %v50, %v123
  %v125 = vpop.f32.mrf.mxu0
  %v126 = vadd.f32 %v50, %v125
  %127 = vmatmul.bf16.gmra.mxu0 %v93
  %v128 = vpop.f32.mrf.mxu0
  %v129 = vadd.f32 %v50, %v128
  %v130 = vpop.f32.mrf.mxu0
  %v131 = vadd.f32 %v50, %v130
  %132 = vmatmul.bf16.gmra.mxu0 %v96
  %v133 = vpop.f32.mrf.mxu0
  %v134 = vadd.f32 %v50, %v133
  %v135 = vpop.f32.mrf.mxu0
  %v136 = vadd.f32 %v50, %v135
  %137 = vmatmul.bf16.gmra.mxu0 %v99
  %v138 = vpop.f32.mrf.mxu0
  %v139 = vadd.f32 %v50, %v138
  %v140 = vpop.f32.mrf.mxu0
  %v141 = vadd.f32 %v50, %v140
  %142 = vdwg.mxu0
  %143 = vmatpush.bf16.msra.mxu0 0
  %144 = vmatpush.bf16.msra.mxu0 0
  %145 = vmatpush.bf16.msra.mxu0 0
  %146 = vmatpush.bf16.msra.mxu0 0
  %147 = vmatpush.bf16.msra.mxu0 0
  %148 = vmatpush.bf16.msra.mxu0 0
  %149 = vmatpush.bf16.msra.mxu0 %v106
  %150 = vmatpush.bf16.msra.mxu0 %v77
  %151 = vmatmul.bf16.gmra.mxu0 %v90
  %v152 = vpop.f32.mrf.mxu0
  %v153 = vadd.f32 %v51, %v152
  %v154 = vpop.f32.mrf.mxu0
  %v155 = vadd.f32 %v51, %v154
  %156 = vmatmul.bf16.gmra.mxu0 %v93
  %v157 = vpop.f32.mrf.mxu0
  %v158 = vadd.f32 %v51, %v157
  %v159 = vpop.f32.mrf.mxu0
  %v160 = vadd.f32 %v51, %v159
  %161 = vmatmul.bf16.gmra.mxu0 %v96
  %v162 = vpop.f32.mrf.mxu0
  %v163 = vadd.f32 %v51, %v162
  %v164 = vpop.f32.mrf.mxu0
  %v165 = vadd.f32 %v51, %v164
  %166 = vmatmul.bf16.gmra.mxu0 %v99
  %v167 = vpop.f32.mrf.mxu0
  %v168 = vadd.f32 %v51, %v167
  %v169 = vpop.f32.mrf.mxu0
  %v170 = vadd.f32 %v51, %v169
  %171 = vdwg.mxu0
  %172 = vmatpush.bf16.msra.mxu0 0
  %173 = vmatpush.bf16.msra.mxu0 0
  %174 = vmatpush.bf16.msra.mxu0 0
  %175 = vmatpush.bf16.msra.mxu0 0
  %176 = vmatpush.bf16.msra.mxu0 0
  %177 = vmatpush.bf16.msra.mxu0 0
  %178 = vmatpush.bf16.msra.mxu0 %v109
  %179 = vmatpush.bf16.msra.mxu0 %v78
  %180 = vmatmul.bf16.gmra.mxu0 %v90
  %v181 = vpop.f32.mrf.mxu0
  %v182 = vadd.f32 %v52, %v181
  %v183 = vpop.f32.mrf.mxu0
  %v184 = vadd.f32 %v52, %v183
  %185 = vmatmul.bf16.gmra.mxu0 %v93
  %v186 = vpop.f32.mrf.mxu0
  %v187 = vadd.f32 %v52, %v186
  %v188 = vpop.f32.mrf.mxu0
  %v189 = vadd.f32 %v52, %v188
  %190 = vmatmul.bf16.gmra.mxu0 %v96
  %v191 = vpop.f32.mrf.mxu0
  %v192 = vadd.f32 %v52, %v191
  %v193 = vpop.f32.mrf.mxu0
  %v194 = vadd.f32 %v52, %v193
  %195 = vmatmul.bf16.gmra.mxu0 %v99
  %v196 = vpop.f32.mrf.mxu0
  %v197 = vadd.f32 %v52, %v196
  %v198 = vpop.f32.mrf.mxu0
  %v199 = vadd.f32 %v52, %v198
  %200 = vdwg.mxu0
  %201 = vmatpush.bf16.msra.mxu0 0
  %202 = vmatpush.bf16.msra.mxu0 0
  %203 = vmatpush.bf16.msra.mxu0 0
  %204 = vmatpush.bf16.msra.mxu0 0
  %205 = vmatpush.bf16.msra.mxu0 0
  %206 = vmatpush.bf16.msra.mxu0 0
  %207 = vmatpush.bf16.msra.mxu0 %v112
  %208 = vmatpush.bf16.msra.mxu0 %v79
  %209 = vmatmul.bf16.gmra.mxu0 %v90
  %v210 = vpop.f32.mrf.mxu0
  %v211 = vadd.f32 %v53, %v210
  %v212 = vpop.f32.mrf.mxu0
  %v213 = vadd.f32 %v53, %v212
  %214 = vmatmul.bf16.gmra.mxu0 %v93
  %v215 = vpop.f32.mrf.mxu0
  %v216 = vadd.f32 %v53, %v215
  %v217 = vpop.f32.mrf.mxu0
  %v218 = vadd.f32 %v53, %v217
  %219 = vmatmul.bf16.gmra.mxu0 %v96
  %v220 = vpop.f32.mrf.mxu0
  %v221 = vadd.f32 %v53, %v220
  %v222 = vpop.f32.mrf.mxu0
  %v223 = vadd.f32 %v53, %v222
  %224 = vmatmul.bf16.gmra.mxu0 %v99
  %v225 = vpop.f32.mrf.mxu0
  %v226 = vadd.f32 %v53, %v225
  %v227 = vpop.f32.mrf.mxu0
  %v228 = vadd.f32 %v53, %v227
  %229 = vdwg.mxu0
  %v230 = vld [vmem:[%s2] sm:$0xff]
  %v231 = vld [vmem:[%s2 + $0x8] sm:$0xff]
  %v232 = vld [vmem:[%s2 + $0x10] sm:$0xff]
  %v233 = vld [vmem:[%s2 + $0x18] sm:$0xff]
  %v234 = vld [vmem:[%s2 + $0x20] sm:$0xff]
  %v235 = vld [vmem:[%s2 + $0x28] sm:$0xff]
  %v236 = vld [vmem:[%s2 + $0x30] sm:$0xff]
  %v237 = vld [vmem:[%s2 + $0x38] sm:$0xff]
  %v238 = vld [vmem:[%s2 + $0x40] sm:$0xff]
  %v239 = vld [vmem:[%s2 + $0x48] sm:$0xff]
  %v240 = vld [vmem:[%s2 + $0x50] sm:$0xff]
  %v241 = vld [vmem:[%s2 + $0x58] sm:$0xff]
  %v242 = vld [vmem:[%s2 + $0x60] sm:$0xff]
  %v243 = vld [vmem:[%s2 + $0x68] sm:$0xff]
  %v244 = vld [vmem:[%s2 + $0x70] sm:$0xff]
  %v245 = vld [vmem:[%s2 + $0x78] sm:$0xff]
  %v246 = vld [vmem:[%s2 + $0x80] sm:$0xff]
  %v247 = vld [vmem:[%s2 + $0x88] sm:$0xff]
  %v248 = vld [vmem:[%s2 + $0x90] sm:$0xff]
  %v249 = vld [vmem:[%s2 + $0x98] sm:$0xff]
  %v250 = vld [vmem:[%s2 + $0xa0] sm:$0xff]
  %v251 = vld [vmem:[%s2 + $0xa8] sm:$0xff]
  %v252 = vld [vmem:[%s2 + $0xb0] sm:$0xff]
  %v253 = vld [vmem:[%s2 + $0xb8] sm:$0xff]
  %v254 = vld [vmem:[%s2 + $0xc0] sm:$0xff]
  %v255 = vld [vmem:[%s2 + $0xc8] sm:$0xff]
  %v256 = vld [vmem:[%s2 + $0xd0] sm:$0xff]
  %v257 = vld [vmem:[%s2 + $0xd8] sm:$0xff]
  %v258 = vld [vmem:[%s2 + $0xe0] sm:$0xff]
  %v259 = vld [vmem:[%s2 + $0xe8] sm:$0xff]
  %v260 = vld [vmem:[%s2 + $0xf0] sm:$0xff]
  %v261 = vld [vmem:[%s2 + $0xf8] sm:$0xff]
  %v294 = vunpack.c.l.b16 %v230
  %v295 = vunpack.c.h.b16 %v230
  %v296 = vunpack.c.l.b16 %v231
  %v297 = vunpack.c.h.b16 %v231
  %v298 = vunpack.c.l.b16 %v232
  %v299 = vunpack.c.h.b16 %v232
  %v300 = vunpack.c.l.b16 %v233
  %v301 = vunpack.c.h.b16 %v233
  %v302 = vunpack.c.l.b16 %v234
  %v303 = vunpack.c.h.b16 %v234
  %v304 = vunpack.c.l.b16 %v235
  %v305 = vunpack.c.h.b16 %v235
  %v306 = vunpack.c.l.b16 %v236
  %v307 = vunpack.c.h.b16 %v236
  %v308 = vunpack.c.l.b16 %v237
  %v309 = vunpack.c.h.b16 %v237
  %v310 = vunpack.c.l.b16 %v238
  %v311 = vunpack.c.h.b16 %v238
  %v312 = vunpack.c.l.b16 %v239
  %v313 = vunpack.c.h.b16 %v239
  %v314 = vunpack.c.l.b16 %v240
  %v315 = vunpack.c.h.b16 %v240
  %v316 = vunpack.c.l.b16 %v241
  %v317 = vunpack.c.h.b16 %v241
  %v318 = vunpack.c.l.b16 %v242
  %v319 = vunpack.c.h.b16 %v242
  %v320 = vunpack.c.l.b16 %v243
  %v321 = vunpack.c.h.b16 %v243
  %v322 = vunpack.c.l.b16 %v244
  %v323 = vunpack.c.h.b16 %v244
  %v324 = vunpack.c.l.b16 %v245
  %v325 = vunpack.c.h.b16 %v245
  %v326 = vunpack.c.l.b16 %v246
  %v327 = vunpack.c.h.b16 %v246
  %v328 = vunpack.c.l.b16 %v247
  %v329 = vunpack.c.h.b16 %v247
  %v330 = vunpack.c.l.b16 %v248
  %v331 = vunpack.c.h.b16 %v248
  %v332 = vunpack.c.l.b16 %v249
  %v333 = vunpack.c.h.b16 %v249
  %v334 = vunpack.c.l.b16 %v250
  %v335 = vunpack.c.h.b16 %v250
  %v336 = vunpack.c.l.b16 %v251
  %v337 = vunpack.c.h.b16 %v251
  %v338 = vunpack.c.l.b16 %v252
  %v339 = vunpack.c.h.b16 %v252
  %v340 = vunpack.c.l.b16 %v253
  %v341 = vunpack.c.h.b16 %v253
  %v342 = vunpack.c.l.b16 %v254
  %v343 = vunpack.c.h.b16 %v254
  %v344 = vunpack.c.l.b16 %v255
  %v345 = vunpack.c.h.b16 %v255
  %v346 = vunpack.c.l.b16 %v256
  %v347 = vunpack.c.h.b16 %v256
  %v348 = vunpack.c.l.b16 %v257
  %v349 = vunpack.c.h.b16 %v257
  %v350 = vunpack.c.l.b16 %v258
  %v351 = vunpack.c.h.b16 %v258
  %v352 = vunpack.c.l.b16 %v259
  %v353 = vunpack.c.h.b16 %v259
  %v354 = vunpack.c.l.b16 %v260
  %v355 = vunpack.c.h.b16 %v260
  %v356 = vunpack.c.l.b16 %v261
  %v357 = vunpack.c.h.b16 %v261
  %v358 = vpack.c.b16 %v298, %v294
  %v359 = vpack.c.b16 %v299, %v295
  %v360 = vpack.c.b16 %v300, %v296
  %v361 = vpack.c.b16 %v301, %v297
  %v362 = vpack.c.b16 %v306, %v302
  %v363 = vpack.c.b16 %v307, %v303
  %v364 = vpack.c.b16 %v308, %v304
  %v365 = vpack.c.b16 %v309, %v305
  %v366 = vpack.c.b16 %v314, %v310
  %v367 = vpack.c.b16 %v315, %v311
  %v368 = vpack.c.b16 %v316, %v312
  %v369 = vpack.c.b16 %v317, %v313
  %v370 = vpack.c.b16 %v322, %v318
  %v371 = vpack.c.b16 %v323, %v319
  %v372 = vpack.c.b16 %v324, %v320
  %v373 = vpack.c.b16 %v325, %v321
  %v374 = vpack.c.b16 %v330, %v326
  %v375 = vpack.c.b16 %v331, %v327
  %v376 = vpack.c.b16 %v332, %v328
  %v377 = vpack.c.b16 %v333, %v329
  %v378 = vpack.c.b16 %v338, %v334
  %v379 = vpack.c.b16 %v339, %v335
  %v380 = vpack.c.b16 %v340, %v336
  %v381 = vpack.c.b16 %v341, %v337
  %v382 = vpack.c.b16 %v346, %v342
  %v383 = vpack.c.b16 %v347, %v343
  %v384 = vpack.c.b16 %v348, %v344
  %v385 = vpack.c.b16 %v349, %v345
  %v386 = vpack.c.b16 %v354, %v350
  %v387 = vpack.c.b16 %v355, %v351
  %v388 = vpack.c.b16 %v356, %v352
  %v389 = vpack.c.b16 %v357, %v353
  %422 = vmatpush.bf16.msra.mxu0 %v386
  %423 = vmatpush.bf16.msra.mxu0 %v382
  %424 = vmatpush.bf16.msra.mxu0 %v378
  %425 = vmatpush.bf16.msra.mxu0 %v374
  %426 = vmatpush.bf16.msra.mxu0 %v370
  %427 = vmatpush.bf16.msra.mxu0 %v366
  %428 = vmatpush.bf16.msra.mxu0 %v362
  %429 = vmatpush.bf16.msra.mxu0 %v358
  %430 = vmatmul.bf16.gmra.mxu0 0
  %v431 = vpop.f32.mrf.mxu0
  %v432 = vadd.f32 0.0, %v431
  %v433 = vpop.f32.mrf.mxu0
  %434 = vdwg.mxu0
  %435 = vmatpush.bf16.msra.mxu0 %v387
  %436 = vmatpush.bf16.msra.mxu0 %v383
  %437 = vmatpush.bf16.msra.mxu0 %v379
  %438 = vmatpush.bf16.msra.mxu0 %v375
  %439 = vmatpush.bf16.msra.mxu0 %v371
  %440 = vmatpush.bf16.msra.mxu0 %v367
  %441 = vmatpush.bf16.msra.mxu0 %v363
  %442 = vmatpush.bf16.msra.mxu0 %v359
  %443 = vmatmul.bf16.gmra.mxu0 0
  %v444 = vpop.f32.mrf.mxu0
  %v445 = vadd.f32 0.0, %v444
  %v446 = vpop.f32.mrf.mxu0
  %447 = vdwg.mxu0
  %448 = vmatpush.bf16.msra.mxu0 %v388
  %449 = vmatpush.bf16.msra.mxu0 %v384
  %450 = vmatpush.bf16.msra.mxu0 %v380
  %451 = vmatpush.bf16.msra.mxu0 %v376
  %452 = vmatpush.bf16.msra.mxu0 %v372
  %453 = vmatpush.bf16.msra.mxu0 %v368
  %454 = vmatpush.bf16.msra.mxu0 %v364
  %455 = vmatpush.bf16.msra.mxu0 %v360
  %456 = vmatmul.bf16.gmra.mxu0 0
  %v457 = vpop.f32.mrf.mxu0
  %v458 = vadd.f32 0.0, %v457
  %v459 = vpop.f32.mrf.mxu0
  %460 = vdwg.mxu0
  %461 = vmatpush.bf16.msra.mxu0 %v389
  %462 = vmatpush.bf16.msra.mxu0 %v385
  %463 = vmatpush.bf16.msra.mxu0 %v381
  %464 = vmatpush.bf16.msra.mxu0 %v377
  %465 = vmatpush.bf16.msra.mxu0 %v373
  %466 = vmatpush.bf16.msra.mxu0 %v369
  %467 = vmatpush.bf16.msra.mxu0 %v365
  %468 = vmatpush.bf16.msra.mxu0 %v361
  %469 = vmatmul.bf16.gmra.mxu0 0
  %v470 = vpop.f32.mrf.mxu0
  %v471 = vadd.f32 0.0, %v470
  %v472 = vpop.f32.mrf.mxu0
  %473 = vdwg.mxu0
  %v474 = vadd.f32 %v124, %v432
  %v475 = vadd.f32 %v153, %v445
  %v476 = vadd.f32 %v182, %v458
  %v477 = vadd.f32 %v211, %v471
  %v478 = vmul.f32 %v474, 0.5
  %v479 = vtanh.pop %v478
  %v480 = vmul.f32 %v479, 0.5
  %v481 = vadd.f32 %v480, 0.5
  %v482 = vmul.f32 %v475, 0.5
  %v483 = vtanh.pop %v482
  %v484 = vmul.f32 %v483, 0.5
  %v485 = vadd.f32 %v484, 0.5
  %v486 = vtanh.pop %v476
  %v487 = vmul.f32 %v477, 0.5
  %v488 = vtanh.pop %v487
  %v489 = vmul.f32 %v488, 0.5
  %v490 = vadd.f32 %v489, 0.5
  %v491 = vmul.f32 %v485, 0.0
  %v492 = vmul.f32 %v481, %v486
  %v493 = vadd.f32 %v491, %v492
  %v494 = vtanh.pop %v493
  %v495 = vmul.f32 %v490, %v494
  %v496 = vpack.c.bf16 %v495, %v495
  %497 = vmatpush.bf16.msra.mxu0 %v386
  %498 = vmatpush.bf16.msra.mxu0 %v382
  %499 = vmatpush.bf16.msra.mxu0 %v378
  %500 = vmatpush.bf16.msra.mxu0 %v374
  %501 = vmatpush.bf16.msra.mxu0 %v370
  %502 = vmatpush.bf16.msra.mxu0 %v366
  %503 = vmatpush.bf16.msra.mxu0 %v362
  %504 = vmatpush.bf16.msra.mxu0 %v358
  %505 = vmatmul.bf16.gmra.mxu0 %v496
  %v506 = vpop.f32.mrf.mxu0
  %v507 = vadd.f32 0.0, %v506
  %v508 = vpop.f32.mrf.mxu0
  %509 = vdwg.mxu0
  %510 = vmatpush.bf16.msra.mxu0 %v387
  %511 = vmatpush.bf16.msra.mxu0 %v383
  %512 = vmatpush.bf16.msra.mxu0 %v379
  %513 = vmatpush.bf16.msra.mxu0 %v375
  %514 = vmatpush.bf16.msra.mxu0 %v371
  %515 = vmatpush.bf16.msra.mxu0 %v367
  %516 = vmatpush.bf16.msra.mxu0 %v363
  %517 = vmatpush.bf16.msra.mxu0 %v359
  %518 = vmatmul.bf16.gmra.mxu0 %v496
  %v519 = vpop.f32.mrf.mxu0
  %v520 = vadd.f32 0.0, %v519
  %v521 = vpop.f32.mrf.mxu0
  %522 = vdwg.mxu0
  %523 = vmatpush.bf16.msra.mxu0 %v388
  %524 = vmatpush.bf16.msra.mxu0 %v384
  %525 = vmatpush.bf16.msra.mxu0 %v380
  %526 = vmatpush.bf16.msra.mxu0 %v376
  %527 = vmatpush.bf16.msra.mxu0 %v372
  %528 = vmatpush.bf16.msra.mxu0 %v368
  %529 = vmatpush.bf16.msra.mxu0 %v364
  %530 = vmatpush.bf16.msra.mxu0 %v360
  %531 = vmatmul.bf16.gmra.mxu0 %v496
  %v532 = vpop.f32.mrf.mxu0
  %v533 = vadd.f32 0.0, %v532
  %v534 = vpop.f32.mrf.mxu0
  %535 = vdwg.mxu0
  %536 = vmatpush.bf16.msra.mxu0 %v389
  %537 = vmatpush.bf16.msra.mxu0 %v385
  %538 = vmatpush.bf16.msra.mxu0 %v381
  %539 = vmatpush.bf16.msra.mxu0 %v377
  %540 = vmatpush.bf16.msra.mxu0 %v373
  %541 = vmatpush.bf16.msra.mxu0 %v369
  %542 = vmatpush.bf16.msra.mxu0 %v365
  %543 = vmatpush.bf16.msra.mxu0 %v361
  %544 = vmatmul.bf16.gmra.mxu0 %v496
  %v545 = vpop.f32.mrf.mxu0
  %v546 = vadd.f32 0.0, %v545
  %v547 = vpop.f32.mrf.mxu0
  %548 = vdwg.mxu0
  %v549 = vadd.f32 %v126, %v507
  %v550 = vadd.f32 %v155, %v520
  %v551 = vadd.f32 %v184, %v533
  %v552 = vadd.f32 %v213, %v546
  %v553 = vmul.f32 %v549, 0.5
  %v554 = vtanh.pop %v553
  %v555 = vmul.f32 %v554, 0.5
  %v556 = vadd.f32 %v555, 0.5
  %v557 = vmul.f32 %v550, 0.5
  %v558 = vtanh.pop %v557
  %v559 = vmul.f32 %v558, 0.5
  %v560 = vadd.f32 %v559, 0.5
  %v561 = vtanh.pop %v551
  %v562 = vmul.f32 %v552, 0.5
  %v563 = vtanh.pop %v562
  %v564 = vmul.f32 %v563, 0.5
  %v565 = vadd.f32 %v564, 0.5
  %v566 = vmul.f32 %v560, %v493
  %v567 = vmul.f32 %v556, %v561
  %v568 = vadd.f32 %v566, %v567
  %v569 = vtanh.pop %v568
  %v570 = vmul.f32 %v565, %v569
  %v571 = vpack.c.bf16 %v570, %v570
  %572 = vmatpush.bf16.msra.mxu0 %v386
  %573 = vmatpush.bf16.msra.mxu0 %v382
  %574 = vmatpush.bf16.msra.mxu0 %v378
  %575 = vmatpush.bf16.msra.mxu0 %v374
  %576 = vmatpush.bf16.msra.mxu0 %v370
  %577 = vmatpush.bf16.msra.mxu0 %v366
  %578 = vmatpush.bf16.msra.mxu0 %v362
  %579 = vmatpush.bf16.msra.mxu0 %v358
  %580 = vmatmul.bf16.gmra.mxu0 %v571
  %v581 = vpop.f32.mrf.mxu0
  %v582 = vadd.f32 0.0, %v581
  %v583 = vpop.f32.mrf.mxu0
  %584 = vdwg.mxu0
  %585 = vmatpush.bf16.msra.mxu0 %v387
  %586 = vmatpush.bf16.msra.mxu0 %v383
  %587 = vmatpush.bf16.msra.mxu0 %v379
  %588 = vmatpush.bf16.msra.mxu0 %v375
  %589 = vmatpush.bf16.msra.mxu0 %v371
  %590 = vmatpush.bf16.msra.mxu0 %v367
  %591 = vmatpush.bf16.msra.mxu0 %v363
  %592 = vmatpush.bf16.msra.mxu0 %v359
  %593 = vmatmul.bf16.gmra.mxu0 %v571
  %v594 = vpop.f32.mrf.mxu0
  %v595 = vadd.f32 0.0, %v594
  %v596 = vpop.f32.mrf.mxu0
  %597 = vdwg.mxu0
  %598 = vmatpush.bf16.msra.mxu0 %v388
  %599 = vmatpush.bf16.msra.mxu0 %v384
  %600 = vmatpush.bf16.msra.mxu0 %v380
  %601 = vmatpush.bf16.msra.mxu0 %v376
  %602 = vmatpush.bf16.msra.mxu0 %v372
  %603 = vmatpush.bf16.msra.mxu0 %v368
  %604 = vmatpush.bf16.msra.mxu0 %v364
  %605 = vmatpush.bf16.msra.mxu0 %v360
  %606 = vmatmul.bf16.gmra.mxu0 %v571
  %v607 = vpop.f32.mrf.mxu0
  %v608 = vadd.f32 0.0, %v607
  %v609 = vpop.f32.mrf.mxu0
  %610 = vdwg.mxu0
  %611 = vmatpush.bf16.msra.mxu0 %v389
  %612 = vmatpush.bf16.msra.mxu0 %v385
  %613 = vmatpush.bf16.msra.mxu0 %v381
  %614 = vmatpush.bf16.msra.mxu0 %v377
  %615 = vmatpush.bf16.msra.mxu0 %v373
  %616 = vmatpush.bf16.msra.mxu0 %v369
  %617 = vmatpush.bf16.msra.mxu0 %v365
  %618 = vmatpush.bf16.msra.mxu0 %v361
  %619 = vmatmul.bf16.gmra.mxu0 %v571
  %v620 = vpop.f32.mrf.mxu0
  %v621 = vadd.f32 0.0, %v620
  %v622 = vpop.f32.mrf.mxu0
  %623 = vdwg.mxu0
  %v624 = vadd.f32 %v129, %v582
  %v625 = vadd.f32 %v158, %v595
  %v626 = vadd.f32 %v187, %v608
  %v627 = vadd.f32 %v216, %v621
  %v628 = vmul.f32 %v624, 0.5
  %v629 = vtanh.pop %v628
  %v630 = vmul.f32 %v629, 0.5
  %v631 = vadd.f32 %v630, 0.5
  %v632 = vmul.f32 %v625, 0.5
  %v633 = vtanh.pop %v632
  %v634 = vmul.f32 %v633, 0.5
  %v635 = vadd.f32 %v634, 0.5
  %v636 = vtanh.pop %v626
  %v637 = vmul.f32 %v627, 0.5
  %v638 = vtanh.pop %v637
  %v639 = vmul.f32 %v638, 0.5
  %v640 = vadd.f32 %v639, 0.5
  %v641 = vmul.f32 %v635, %v568
  %v642 = vmul.f32 %v631, %v636
  %v643 = vadd.f32 %v641, %v642
  %v644 = vtanh.pop %v643
  %v645 = vmul.f32 %v640, %v644
  %v646 = vpack.c.bf16 %v645, %v645
  %647 = vmatpush.bf16.msra.mxu0 %v386
  %648 = vmatpush.bf16.msra.mxu0 %v382
  %649 = vmatpush.bf16.msra.mxu0 %v378
  %650 = vmatpush.bf16.msra.mxu0 %v374
  %651 = vmatpush.bf16.msra.mxu0 %v370
  %652 = vmatpush.bf16.msra.mxu0 %v366
  %653 = vmatpush.bf16.msra.mxu0 %v362
  %654 = vmatpush.bf16.msra.mxu0 %v358
  %655 = vmatmul.bf16.gmra.mxu0 %v646
  %v656 = vpop.f32.mrf.mxu0
  %v657 = vadd.f32 0.0, %v656
  %v658 = vpop.f32.mrf.mxu0
  %659 = vdwg.mxu0
  %660 = vmatpush.bf16.msra.mxu0 %v387
  %661 = vmatpush.bf16.msra.mxu0 %v383
  %662 = vmatpush.bf16.msra.mxu0 %v379
  %663 = vmatpush.bf16.msra.mxu0 %v375
  %664 = vmatpush.bf16.msra.mxu0 %v371
  %665 = vmatpush.bf16.msra.mxu0 %v367
  %666 = vmatpush.bf16.msra.mxu0 %v363
  %667 = vmatpush.bf16.msra.mxu0 %v359
  %668 = vmatmul.bf16.gmra.mxu0 %v646
  %v669 = vpop.f32.mrf.mxu0
  %v670 = vadd.f32 0.0, %v669
  %v671 = vpop.f32.mrf.mxu0
  %672 = vdwg.mxu0
  %673 = vmatpush.bf16.msra.mxu0 %v388
  %674 = vmatpush.bf16.msra.mxu0 %v384
  %675 = vmatpush.bf16.msra.mxu0 %v380
  %676 = vmatpush.bf16.msra.mxu0 %v376
  %677 = vmatpush.bf16.msra.mxu0 %v372
  %678 = vmatpush.bf16.msra.mxu0 %v368
  %679 = vmatpush.bf16.msra.mxu0 %v364
  %680 = vmatpush.bf16.msra.mxu0 %v360
  %681 = vmatmul.bf16.gmra.mxu0 %v646
  %v682 = vpop.f32.mrf.mxu0
  %v683 = vadd.f32 0.0, %v682
  %v684 = vpop.f32.mrf.mxu0
  %685 = vdwg.mxu0
  %686 = vmatpush.bf16.msra.mxu0 %v389
  %687 = vmatpush.bf16.msra.mxu0 %v385
  %688 = vmatpush.bf16.msra.mxu0 %v381
  %689 = vmatpush.bf16.msra.mxu0 %v377
  %690 = vmatpush.bf16.msra.mxu0 %v373
  %691 = vmatpush.bf16.msra.mxu0 %v369
  %692 = vmatpush.bf16.msra.mxu0 %v365
  %693 = vmatpush.bf16.msra.mxu0 %v361
  %694 = vmatmul.bf16.gmra.mxu0 %v646
  %v695 = vpop.f32.mrf.mxu0
  %v696 = vadd.f32 0.0, %v695
  %v697 = vpop.f32.mrf.mxu0
  %698 = vdwg.mxu0
  %v699 = vadd.f32 %v131, %v657
  %v700 = vadd.f32 %v160, %v670
  %v701 = vadd.f32 %v189, %v683
  %v702 = vadd.f32 %v218, %v696
  %v703 = vmul.f32 %v699, 0.5
  %v704 = vtanh.pop %v703
  %v705 = vmul.f32 %v704, 0.5
  %v706 = vadd.f32 %v705, 0.5
  %v707 = vmul.f32 %v700, 0.5
  %v708 = vtanh.pop %v707
  %v709 = vmul.f32 %v708, 0.5
  %v710 = vadd.f32 %v709, 0.5
  %v711 = vtanh.pop %v701
  %v712 = vmul.f32 %v702, 0.5
  %v713 = vtanh.pop %v712
  %v714 = vmul.f32 %v713, 0.5
  %v715 = vadd.f32 %v714, 0.5
  %v716 = vmul.f32 %v710, %v643
  %v717 = vmul.f32 %v706, %v711
  %v718 = vadd.f32 %v716, %v717
  %v719 = vtanh.pop %v718
  %v720 = vmul.f32 %v715, %v719
  %v721 = vpack.c.bf16 %v720, %v720
  %722 = vmatpush.bf16.msra.mxu0 %v386
  %723 = vmatpush.bf16.msra.mxu0 %v382
  %724 = vmatpush.bf16.msra.mxu0 %v378
  %725 = vmatpush.bf16.msra.mxu0 %v374
  %726 = vmatpush.bf16.msra.mxu0 %v370
  %727 = vmatpush.bf16.msra.mxu0 %v366
  %728 = vmatpush.bf16.msra.mxu0 %v362
  %729 = vmatpush.bf16.msra.mxu0 %v358
  %730 = vmatmul.bf16.gmra.mxu0 %v721
  %v731 = vpop.f32.mrf.mxu0
  %v732 = vadd.f32 0.0, %v731
  %v733 = vpop.f32.mrf.mxu0
  %734 = vdwg.mxu0
  %735 = vmatpush.bf16.msra.mxu0 %v387
  %736 = vmatpush.bf16.msra.mxu0 %v383
  %737 = vmatpush.bf16.msra.mxu0 %v379
  %738 = vmatpush.bf16.msra.mxu0 %v375
  %739 = vmatpush.bf16.msra.mxu0 %v371
  %740 = vmatpush.bf16.msra.mxu0 %v367
  %741 = vmatpush.bf16.msra.mxu0 %v363
  %742 = vmatpush.bf16.msra.mxu0 %v359
  %743 = vmatmul.bf16.gmra.mxu0 %v721
  %v744 = vpop.f32.mrf.mxu0
  %v745 = vadd.f32 0.0, %v744
  %v746 = vpop.f32.mrf.mxu0
  %747 = vdwg.mxu0
  %748 = vmatpush.bf16.msra.mxu0 %v388
  %749 = vmatpush.bf16.msra.mxu0 %v384
  %750 = vmatpush.bf16.msra.mxu0 %v380
  %751 = vmatpush.bf16.msra.mxu0 %v376
  %752 = vmatpush.bf16.msra.mxu0 %v372
  %753 = vmatpush.bf16.msra.mxu0 %v368
  %754 = vmatpush.bf16.msra.mxu0 %v364
  %755 = vmatpush.bf16.msra.mxu0 %v360
  %756 = vmatmul.bf16.gmra.mxu0 %v721
  %v757 = vpop.f32.mrf.mxu0
  %v758 = vadd.f32 0.0, %v757
  %v759 = vpop.f32.mrf.mxu0
  %760 = vdwg.mxu0
  %761 = vmatpush.bf16.msra.mxu0 %v389
  %762 = vmatpush.bf16.msra.mxu0 %v385
  %763 = vmatpush.bf16.msra.mxu0 %v381
  %764 = vmatpush.bf16.msra.mxu0 %v377
  %765 = vmatpush.bf16.msra.mxu0 %v373
  %766 = vmatpush.bf16.msra.mxu0 %v369
  %767 = vmatpush.bf16.msra.mxu0 %v365
  %768 = vmatpush.bf16.msra.mxu0 %v361
  %769 = vmatmul.bf16.gmra.mxu0 %v721
  %v770 = vpop.f32.mrf.mxu0
  %v771 = vadd.f32 0.0, %v770
  %v772 = vpop.f32.mrf.mxu0
  %773 = vdwg.mxu0
  %v774 = vadd.f32 %v134, %v732
  %v775 = vadd.f32 %v163, %v745
  %v776 = vadd.f32 %v192, %v758
  %v777 = vadd.f32 %v221, %v771
  %v778 = vmul.f32 %v774, 0.5
  %v779 = vtanh.pop %v778
  %v780 = vmul.f32 %v779, 0.5
  %v781 = vadd.f32 %v780, 0.5
  %v782 = vmul.f32 %v775, 0.5
  %v783 = vtanh.pop %v782
  %v784 = vmul.f32 %v783, 0.5
  %v785 = vadd.f32 %v784, 0.5
  %v786 = vtanh.pop %v776
  %v787 = vmul.f32 %v777, 0.5
  %v788 = vtanh.pop %v787
  %v789 = vmul.f32 %v788, 0.5
  %v790 = vadd.f32 %v789, 0.5
  %v791 = vmul.f32 %v785, %v718
  %v792 = vmul.f32 %v781, %v786
  %v793 = vadd.f32 %v791, %v792
  %v794 = vtanh.pop %v793
  %v795 = vmul.f32 %v790, %v794
  %v796 = vpack.c.bf16 %v795, %v795
  %797 = vmatpush.bf16.msra.mxu0 %v386
  %798 = vmatpush.bf16.msra.mxu0 %v382
  %799 = vmatpush.bf16.msra.mxu0 %v378
  %800 = vmatpush.bf16.msra.mxu0 %v374
  %801 = vmatpush.bf16.msra.mxu0 %v370
  %802 = vmatpush.bf16.msra.mxu0 %v366
  %803 = vmatpush.bf16.msra.mxu0 %v362
  %804 = vmatpush.bf16.msra.mxu0 %v358
  %805 = vmatmul.bf16.gmra.mxu0 %v796
  %v806 = vpop.f32.mrf.mxu0
  %v807 = vadd.f32 0.0, %v806
  %v808 = vpop.f32.mrf.mxu0
  %809 = vdwg.mxu0
  %810 = vmatpush.bf16.msra.mxu0 %v387
  %811 = vmatpush.bf16.msra.mxu0 %v383
  %812 = vmatpush.bf16.msra.mxu0 %v379
  %813 = vmatpush.bf16.msra.mxu0 %v375
  %814 = vmatpush.bf16.msra.mxu0 %v371
  %815 = vmatpush.bf16.msra.mxu0 %v367
  %816 = vmatpush.bf16.msra.mxu0 %v363
  %817 = vmatpush.bf16.msra.mxu0 %v359
  %818 = vmatmul.bf16.gmra.mxu0 %v796
  %v819 = vpop.f32.mrf.mxu0
  %v820 = vadd.f32 0.0, %v819
  %v821 = vpop.f32.mrf.mxu0
  %822 = vdwg.mxu0
  %823 = vmatpush.bf16.msra.mxu0 %v388
  %824 = vmatpush.bf16.msra.mxu0 %v384
  %825 = vmatpush.bf16.msra.mxu0 %v380
  %826 = vmatpush.bf16.msra.mxu0 %v376
  %827 = vmatpush.bf16.msra.mxu0 %v372
  %828 = vmatpush.bf16.msra.mxu0 %v368
  %829 = vmatpush.bf16.msra.mxu0 %v364
  %830 = vmatpush.bf16.msra.mxu0 %v360
  %831 = vmatmul.bf16.gmra.mxu0 %v796
  %v832 = vpop.f32.mrf.mxu0
  %v833 = vadd.f32 0.0, %v832
  %v834 = vpop.f32.mrf.mxu0
  %835 = vdwg.mxu0
  %836 = vmatpush.bf16.msra.mxu0 %v389
  %837 = vmatpush.bf16.msra.mxu0 %v385
  %838 = vmatpush.bf16.msra.mxu0 %v381
  %839 = vmatpush.bf16.msra.mxu0 %v377
  %840 = vmatpush.bf16.msra.mxu0 %v373
  %841 = vmatpush.bf16.msra.mxu0 %v369
  %842 = vmatpush.bf16.msra.mxu0 %v365
  %843 = vmatpush.bf16.msra.mxu0 %v361
  %844 = vmatmul.bf16.gmra.mxu0 %v796
  %v845 = vpop.f32.mrf.mxu0
  %v846 = vadd.f32 0.0, %v845
  %v847 = vpop.f32.mrf.mxu0
  %848 = vdwg.mxu0
  %v849 = vadd.f32 %v136, %v807
  %v850 = vadd.f32 %v165, %v820
  %v851 = vadd.f32 %v194, %v833
  %v852 = vadd.f32 %v223, %v846
  %v853 = vmul.f32 %v849, 0.5
  %v854 = vtanh.pop %v853
  %v855 = vmul.f32 %v854, 0.5
  %v856 = vadd.f32 %v855, 0.5
  %v857 = vmul.f32 %v850, 0.5
  %v858 = vtanh.pop %v857
  %v859 = vmul.f32 %v858, 0.5
  %v860 = vadd.f32 %v859, 0.5
  %v861 = vtanh.pop %v851
  %v862 = vmul.f32 %v852, 0.5
  %v863 = vtanh.pop %v862
  %v864 = vmul.f32 %v863, 0.5
  %v865 = vadd.f32 %v864, 0.5
  %v866 = vmul.f32 %v860, %v793
  %v867 = vmul.f32 %v856, %v861
  %v868 = vadd.f32 %v866, %v867
  %v869 = vtanh.pop %v868
  %v870 = vmul.f32 %v865, %v869
  %v871 = vpack.c.bf16 %v870, %v870
  %872 = vmatpush.bf16.msra.mxu0 %v386
  %873 = vmatpush.bf16.msra.mxu0 %v382
  %874 = vmatpush.bf16.msra.mxu0 %v378
  %875 = vmatpush.bf16.msra.mxu0 %v374
  %876 = vmatpush.bf16.msra.mxu0 %v370
  %877 = vmatpush.bf16.msra.mxu0 %v366
  %878 = vmatpush.bf16.msra.mxu0 %v362
  %879 = vmatpush.bf16.msra.mxu0 %v358
  %880 = vmatmul.bf16.gmra.mxu0 %v871
  %v881 = vpop.f32.mrf.mxu0
  %v882 = vadd.f32 0.0, %v881
  %v883 = vpop.f32.mrf.mxu0
  %884 = vdwg.mxu0
  %885 = vmatpush.bf16.msra.mxu0 %v387
  %886 = vmatpush.bf16.msra.mxu0 %v383
  %887 = vmatpush.bf16.msra.mxu0 %v379
  %888 = vmatpush.bf16.msra.mxu0 %v375
  %889 = vmatpush.bf16.msra.mxu0 %v371
  %890 = vmatpush.bf16.msra.mxu0 %v367
  %891 = vmatpush.bf16.msra.mxu0 %v363
  %892 = vmatpush.bf16.msra.mxu0 %v359
  %893 = vmatmul.bf16.gmra.mxu0 %v871
  %v894 = vpop.f32.mrf.mxu0
  %v895 = vadd.f32 0.0, %v894
  %v896 = vpop.f32.mrf.mxu0
  %897 = vdwg.mxu0
  %898 = vmatpush.bf16.msra.mxu0 %v388
  %899 = vmatpush.bf16.msra.mxu0 %v384
  %900 = vmatpush.bf16.msra.mxu0 %v380
  %901 = vmatpush.bf16.msra.mxu0 %v376
  %902 = vmatpush.bf16.msra.mxu0 %v372
  %903 = vmatpush.bf16.msra.mxu0 %v368
  %904 = vmatpush.bf16.msra.mxu0 %v364
  %905 = vmatpush.bf16.msra.mxu0 %v360
  %906 = vmatmul.bf16.gmra.mxu0 %v871
  %v907 = vpop.f32.mrf.mxu0
  %v908 = vadd.f32 0.0, %v907
  %v909 = vpop.f32.mrf.mxu0
  %910 = vdwg.mxu0
  %911 = vmatpush.bf16.msra.mxu0 %v389
  %912 = vmatpush.bf16.msra.mxu0 %v385
  %913 = vmatpush.bf16.msra.mxu0 %v381
  %914 = vmatpush.bf16.msra.mxu0 %v377
  %915 = vmatpush.bf16.msra.mxu0 %v373
  %916 = vmatpush.bf16.msra.mxu0 %v369
  %917 = vmatpush.bf16.msra.mxu0 %v365
  %918 = vmatpush.bf16.msra.mxu0 %v361
  %919 = vmatmul.bf16.gmra.mxu0 %v871
  %v920 = vpop.f32.mrf.mxu0
  %v921 = vadd.f32 0.0, %v920
  %v922 = vpop.f32.mrf.mxu0
  %923 = vdwg.mxu0
  %v924 = vadd.f32 %v139, %v882
  %v925 = vadd.f32 %v168, %v895
  %v926 = vadd.f32 %v197, %v908
  %v927 = vadd.f32 %v226, %v921
  %v928 = vmul.f32 %v924, 0.5
  %v929 = vtanh.pop %v928
  %v930 = vmul.f32 %v929, 0.5
  %v931 = vadd.f32 %v930, 0.5
  %v932 = vmul.f32 %v925, 0.5
  %v933 = vtanh.pop %v932
  %v934 = vmul.f32 %v933, 0.5
  %v935 = vadd.f32 %v934, 0.5
  %v936 = vtanh.pop %v926
  %v937 = vmul.f32 %v927, 0.5
  %v938 = vtanh.pop %v937
  %v939 = vmul.f32 %v938, 0.5
  %v940 = vadd.f32 %v939, 0.5
  %v941 = vmul.f32 %v935, %v868
  %v942 = vmul.f32 %v931, %v936
  %v943 = vadd.f32 %v941, %v942
  %v944 = vtanh.pop %v943
  %v945 = vmul.f32 %v940, %v944
  %v946 = vpack.c.bf16 %v945, %v945
  %947 = vmatpush.bf16.msra.mxu0 %v386
  %948 = vmatpush.bf16.msra.mxu0 %v382
  %949 = vmatpush.bf16.msra.mxu0 %v378
  %950 = vmatpush.bf16.msra.mxu0 %v374
  %951 = vmatpush.bf16.msra.mxu0 %v370
  %952 = vmatpush.bf16.msra.mxu0 %v366
  %953 = vmatpush.bf16.msra.mxu0 %v362
  %954 = vmatpush.bf16.msra.mxu0 %v358
  %955 = vmatmul.bf16.gmra.mxu0 %v946
  %v956 = vpop.f32.mrf.mxu0
  %v957 = vadd.f32 0.0, %v956
  %v958 = vpop.f32.mrf.mxu0
  %959 = vdwg.mxu0
  %960 = vmatpush.bf16.msra.mxu0 %v387
  %961 = vmatpush.bf16.msra.mxu0 %v383
  %962 = vmatpush.bf16.msra.mxu0 %v379
  %963 = vmatpush.bf16.msra.mxu0 %v375
  %964 = vmatpush.bf16.msra.mxu0 %v371
  %965 = vmatpush.bf16.msra.mxu0 %v367
  %966 = vmatpush.bf16.msra.mxu0 %v363
  %967 = vmatpush.bf16.msra.mxu0 %v359
  %968 = vmatmul.bf16.gmra.mxu0 %v946
  %v969 = vpop.f32.mrf.mxu0
  %v970 = vadd.f32 0.0, %v969
  %v971 = vpop.f32.mrf.mxu0
  %972 = vdwg.mxu0
  %973 = vmatpush.bf16.msra.mxu0 %v388
  %974 = vmatpush.bf16.msra.mxu0 %v384
  %975 = vmatpush.bf16.msra.mxu0 %v380
  %976 = vmatpush.bf16.msra.mxu0 %v376
  %977 = vmatpush.bf16.msra.mxu0 %v372
  %978 = vmatpush.bf16.msra.mxu0 %v368
  %979 = vmatpush.bf16.msra.mxu0 %v364
  %980 = vmatpush.bf16.msra.mxu0 %v360
  %981 = vmatmul.bf16.gmra.mxu0 %v946
  %v982 = vpop.f32.mrf.mxu0
  %v983 = vadd.f32 0.0, %v982
  %v984 = vpop.f32.mrf.mxu0
  %985 = vdwg.mxu0
  %986 = vmatpush.bf16.msra.mxu0 %v389
  %987 = vmatpush.bf16.msra.mxu0 %v385
  %988 = vmatpush.bf16.msra.mxu0 %v381
  %989 = vmatpush.bf16.msra.mxu0 %v377
  %990 = vmatpush.bf16.msra.mxu0 %v373
  %991 = vmatpush.bf16.msra.mxu0 %v369
  %992 = vmatpush.bf16.msra.mxu0 %v365
  %993 = vmatpush.bf16.msra.mxu0 %v361
  %994 = vmatmul.bf16.gmra.mxu0 %v946
  %v995 = vpop.f32.mrf.mxu0
  %v996 = vadd.f32 0.0, %v995
  %v997 = vpop.f32.mrf.mxu0
  %998 = vdwg.mxu0
  %v999 = vadd.f32 %v141, %v957
  %v1000 = vadd.f32 %v170, %v970
  %v1001 = vadd.f32 %v199, %v983
  %v1002 = vadd.f32 %v228, %v996
  %v1003 = vmul.f32 %v999, 0.5
  %v1004 = vtanh.pop %v1003
  %v1005 = vmul.f32 %v1004, 0.5
  %v1006 = vadd.f32 %v1005, 0.5
  %v1007 = vmul.f32 %v1000, 0.5
  %v1008 = vtanh.pop %v1007
  %v1009 = vmul.f32 %v1008, 0.5
  %v1010 = vadd.f32 %v1009, 0.5
  %v1011 = vtanh.pop %v1001
  %v1012 = vmul.f32 %v1002, 0.5
  %v1013 = vtanh.pop %v1012
  %v1014 = vmul.f32 %v1013, 0.5
  %v1015 = vadd.f32 %v1014, 0.5
  %v1016 = vmul.f32 %v1010, %v943
  %v1017 = vmul.f32 %v1006, %v1011
  %v1018 = vadd.f32 %v1016, %v1017
  %v1019 = vtanh.pop %v1018
  %v1020 = vmul.f32 %v1015, %v1019
  %1021 = vmatpush.xpose.msra.mxu0 0.0
  %1022 = vmatpush.xpose.msra.mxu0 0.0
  %1023 = vmatpush.xpose.msra.mxu0 0.0
  %1024 = vmatpush.xpose.msra.mxu0 0.0
  %1025 = vmatpush.xpose.msra.mxu0 0.0
  %1026 = vmatpush.xpose.msra.mxu0 0.0
  %1027 = vmatpush.xpose.msra.mxu0 0.0
  %1028 = vmatpush.xpose.msra.mxu0 0.0
  %1029 = vmatpush.xpose.msra.mxu0 %v1020
  %1030 = vmatpush.xpose.msra.mxu0 %v945
  %1031 = vmatpush.xpose.msra.mxu0 %v870
  %1032 = vmatpush.xpose.msra.mxu0 %v795
  %1033 = vmatpush.xpose.msra.mxu0 %v720
  %1034 = vmatpush.xpose.msra.mxu0 %v645
  %1035 = vmatpush.xpose.msra.mxu0 %v570
  %1036 = vmatpush.xpose.msra.mxu0 %v495
  %1037 = vmatmul.f32.gmra.mxu0 %v495
  %v1038 = vpop.f32.mrf.mxu0
  %v1039 = vadd.f32 0.0, %v1038
  %1040 = vmatmul.f32.gmra.mxu0 %v570
  %v1041 = vpop.f32.mrf.mxu0
  %v1042 = vadd.f32 0.0, %v1041
  %1043 = vmatmul.f32.gmra.mxu0 %v645
  %v1044 = vpop.f32.mrf.mxu0
  %v1045 = vadd.f32 0.0, %v1044
  %1046 = vmatmul.f32.gmra.mxu0 %v720
  %v1047 = vpop.f32.mrf.mxu0
  %v1048 = vadd.f32 0.0, %v1047
  %1049 = vmatmul.f32.gmra.mxu0 %v795
  %v1050 = vpop.f32.mrf.mxu0
  %v1051 = vadd.f32 0.0, %v1050
  %1052 = vmatmul.f32.gmra.mxu0 %v870
  %v1053 = vpop.f32.mrf.mxu0
  %v1054 = vadd.f32 0.0, %v1053
  %1055 = vmatmul.f32.gmra.mxu0 %v945
  %v1056 = vpop.f32.mrf.mxu0
  %v1057 = vadd.f32 0.0, %v1056
  %1058 = vmatmul.f32.gmra.mxu0 %v1020
  %v1059 = vpop.f32.mrf.mxu0
  %v1060 = vadd.f32 0.0, %v1059
  %1061 = vdwg.mxu0
  %v1062 = vmul.f32 %v1039, 0.15811388
  %v1063 = vmul.f32 %v1042, 0.15811388
  %v1064 = vmul.f32 %v1045, 0.15811388
  %v1065 = vmul.f32 %v1048, 0.15811388
  %v1066 = vmul.f32 %v1051, 0.15811388
  %v1067 = vmul.f32 %v1054, 0.15811388
  %v1068 = vmul.f32 %v1057, 0.15811388
  %v1069 = vmul.f32 %v1060, 0.15811388
  %v1070 = vlaneseq
  %v1071 = vshrl.u32 %v1070, 7
  %v1072 = vadd.s32 %v1071, 8
  %v1073 = vadd.s32 %v1071, 16
  %v1074 = vadd.s32 %v1071, 24
  %v1075 = vadd.s32 %v1071, 32
  %v1076 = vadd.s32 %v1071, 40
  %v1077 = vadd.s32 %v1071, 48
  %v1078 = vadd.s32 %v1071, 56
  %vm1079 = vcmp.lt.s32.totalorder %v1071, 0
  %v1080 = vsub.s32 0, %v1071
  %v1081 = vsel %vm1079, %v1080, %v1071
  %v1082 = vshrl.u32 %v1081, 3
  %v1083 = vand.u32 %v1081, 7
  %v1084 = vsub.s32 0, %v1083
  %v1085 = vsel %vm1079, %v1084, %v1083
  %vm1086 = vcmp.lt.s32.totalorder %v1072, 0
  %v1087 = vsub.s32 0, %v1072
  %v1088 = vsel %vm1086, %v1087, %v1072
  %v1089 = vshrl.u32 %v1088, 3
  %v1090 = vand.u32 %v1088, 7
  %v1091 = vsub.s32 0, %v1090
  %v1092 = vsel %vm1086, %v1091, %v1090
  %vm1093 = vcmp.lt.s32.totalorder %v1073, 0
  %v1094 = vsub.s32 0, %v1073
  %v1095 = vsel %vm1093, %v1094, %v1073
  %v1096 = vshrl.u32 %v1095, 3
  %v1097 = vand.u32 %v1095, 7
  %v1098 = vsub.s32 0, %v1097
  %v1099 = vsel %vm1093, %v1098, %v1097
  %vm1100 = vcmp.lt.s32.totalorder %v1074, 0
  %v1101 = vsub.s32 0, %v1074
  %v1102 = vsel %vm1100, %v1101, %v1074
  %v1103 = vshrl.u32 %v1102, 3
  %v1104 = vand.u32 %v1102, 7
  %v1105 = vsub.s32 0, %v1104
  %v1106 = vsel %vm1100, %v1105, %v1104
  %vm1107 = vcmp.lt.s32.totalorder %v1075, 0
  %v1108 = vsub.s32 0, %v1075
  %v1109 = vsel %vm1107, %v1108, %v1075
  %v1110 = vshrl.u32 %v1109, 3
  %v1111 = vand.u32 %v1109, 7
  %v1112 = vsub.s32 0, %v1111
  %v1113 = vsel %vm1107, %v1112, %v1111
  %vm1114 = vcmp.lt.s32.totalorder %v1076, 0
  %v1115 = vsub.s32 0, %v1076
  %v1116 = vsel %vm1114, %v1115, %v1076
  %v1117 = vshrl.u32 %v1116, 3
  %v1118 = vand.u32 %v1116, 7
  %v1119 = vsub.s32 0, %v1118
  %v1120 = vsel %vm1114, %v1119, %v1118
  %vm1121 = vcmp.lt.s32.totalorder %v1077, 0
  %v1122 = vsub.s32 0, %v1077
  %v1123 = vsel %vm1121, %v1122, %v1077
  %v1124 = vshrl.u32 %v1123, 3
  %v1125 = vand.u32 %v1123, 7
  %v1126 = vsub.s32 0, %v1125
  %v1127 = vsel %vm1121, %v1126, %v1125
  %vm1128 = vcmp.lt.s32.totalorder %v1078, 0
  %v1129 = vsub.s32 0, %v1078
  %v1130 = vsel %vm1128, %v1129, %v1078
  %v1131 = vshrl.u32 %v1130, 3
  %v1132 = vand.u32 %v1130, 7
  %v1133 = vsub.s32 0, %v1132
  %v1134 = vsel %vm1128, %v1133, %v1132
  %vm1135 = vcmp.ne.s32.totalorder %v1085, 0
  %vm1136 = vcmp.ne.s32.totalorder %v1092, 0
  %vm1137 = vcmp.ne.s32.totalorder %v1099, 0
  %vm1138 = vcmp.ne.s32.totalorder %v1106, 0
  %vm1139 = vcmp.ne.s32.totalorder %v1113, 0
  %vm1140 = vcmp.ne.s32.totalorder %v1120, 0
  %vm1141 = vcmp.ne.s32.totalorder %v1127, 0
  %vm1142 = vcmp.ne.s32.totalorder %v1134, 0
  %vm1143 = vcmp.lt.s32.totalorder %v1085, 0
  %vm1144 = vcmp.lt.s32.totalorder %v1092, 0
  %vm1145 = vcmp.lt.s32.totalorder %v1099, 0
  %vm1146 = vcmp.lt.s32.totalorder %v1106, 0
  %vm1147 = vcmp.lt.s32.totalorder %v1113, 0
  %vm1148 = vcmp.lt.s32.totalorder %v1120, 0
  %vm1149 = vcmp.lt.s32.totalorder %v1127, 0
  %vm1150 = vcmp.lt.s32.totalorder %v1134, 0
  %vm1151 = vmand %vm1143, %vm1135
  %vm1152 = vmand %vm1144, %vm1136
  %vm1153 = vmand %vm1145, %vm1137
  %vm1154 = vmand %vm1146, %vm1138
  %vm1155 = vmand %vm1147, %vm1139
  %vm1156 = vmand %vm1148, %vm1140
  %vm1157 = vmand %vm1149, %vm1141
  %vm1158 = vmand %vm1150, %vm1142
  %v1159 = vadd.s32 %v1085, 8
  %v1160 = vadd.s32 %v1092, 8
  %v1161 = vadd.s32 %v1099, 8
  %v1162 = vadd.s32 %v1106, 8
  %v1163 = vadd.s32 %v1113, 8
  %v1164 = vadd.s32 %v1120, 8
  %v1165 = vadd.s32 %v1127, 8
  %v1166 = vadd.s32 %v1134, 8
  %v1167 = vsel %vm1151, %v1159, %v1085
  %v1168 = vsel %vm1152, %v1160, %v1092
  %v1169 = vsel %vm1153, %v1161, %v1099
  %v1170 = vsel %vm1154, %v1162, %v1106
  %v1171 = vsel %vm1155, %v1163, %v1113
  %v1172 = vsel %vm1156, %v1164, %v1120
  %v1173 = vsel %vm1157, %v1165, %v1127
  %v1174 = vsel %vm1158, %v1166, %v1134
  %v1175 = vlaneseq
  %v1176 = vand.u32 %v1175, 127
  %vm1177 = vcmp.lt.s32.totalorder %v1176, 0
  %v1178 = vsub.s32 0, %v1176
  %v1179 = vsel %vm1177, %v1178, %v1176
  %v1180 = vshrl.u32 %v1179, 3
  %v1181 = vand.u32 %v1179, 7
  %v1182 = vsub.s32 0, %v1181
  %v1183 = vsel %vm1177, %v1182, %v1181
  %vm1184 = vcmp.ne.s32.totalorder %v1183, 0
  %vm1185 = vcmp.lt.s32.totalorder %v1183, 0
  %vm1186 = vmand %vm1185, %vm1184
  %v1187 = vadd.s32 %v1183, 8
  %v1188 = vsel %vm1186, %v1187, %v1183
  %vm1189 = vcmp.eq.s32.totalorder %v1167, %v1188
  %vm1190 = vcmp.eq.s32.totalorder %v1168, %v1188
  %vm1191 = vcmp.eq.s32.totalorder %v1169, %v1188
  %vm1192 = vcmp.eq.s32.totalorder %v1170, %v1188
  %vm1193 = vcmp.eq.s32.totalorder %v1171, %v1188
  %vm1194 = vcmp.eq.s32.totalorder %v1172, %v1188
  %vm1195 = vcmp.eq.s32.totalorder %v1173, %v1188
  %vm1196 = vcmp.eq.s32.totalorder %v1174, %v1188
  %v1197 = vsel %vm1189, %v1062, -1e+30
  %v1198 = vsel %vm1190, %v1063, -1e+30
  %v1199 = vsel %vm1191, %v1064, -1e+30
  %v1200 = vsel %vm1192, %v1065, -1e+30
  %v1201 = vsel %vm1193, %v1066, -1e+30
  %v1202 = vsel %vm1194, %v1067, -1e+30
  %v1203 = vsel %vm1195, %v1068, -1e+30
  %v1204 = vsel %vm1196, %v1069, -1e+30
  %vm1205 = vcmask 523264
  %v1206 = vsel %vm1205, %v1197, -inf
  %1207 = vmax.xlane.f32.xlu0 %v1206
  %v1208 = vpop.xlane.xlu0 %1207
  %v1209 = vsel %vm1205, %v1198, -inf
  %1210 = vmax.xlane.f32.xlu0 %v1209
  %v1211 = vpop.xlane.xlu0 %1210
  %v1212 = vsel %vm1205, %v1199, -inf
  %1213 = vmax.xlane.f32.xlu0 %v1212
  %v1214 = vpop.xlane.xlu0 %1213
  %v1215 = vsel %vm1205, %v1200, -inf
  %1216 = vmax.xlane.f32.xlu0 %v1215
  %v1217 = vpop.xlane.xlu0 %1216
  %v1218 = vsel %vm1205, %v1201, -inf
  %1219 = vmax.xlane.f32.xlu0 %v1218
  %v1220 = vpop.xlane.xlu0 %1219
  %v1221 = vsel %vm1205, %v1202, -inf
  %1222 = vmax.xlane.f32.xlu0 %v1221
  %v1223 = vpop.xlane.xlu0 %1222
  %v1224 = vsel %vm1205, %v1203, -inf
  %1225 = vmax.xlane.f32.xlu0 %v1224
  %v1226 = vpop.xlane.xlu0 %1225
  %v1227 = vsel %vm1205, %v1204, -inf
  %1228 = vmax.xlane.f32.xlu0 %v1227
  %v1229 = vpop.xlane.xlu0 %1228
  %v1230 = vsub.f32 %v1197, %v1208
  %v1231 = vsub.f32 %v1198, %v1211
  %v1232 = vsub.f32 %v1199, %v1214
  %v1233 = vsub.f32 %v1200, %v1217
  %v1234 = vsub.f32 %v1201, %v1220
  %v1235 = vsub.f32 %v1202, %v1223
  %v1236 = vsub.f32 %v1203, %v1226
  %v1237 = vsub.f32 %v1204, %v1229
  %v1238 = vmul.f32 %v1230, 1.442695
  %v1239 = vpow.pop %v1238
  %v1240 = vmul.f32 %v1231, 1.442695
  %v1241 = vpow.pop %v1240
  %v1242 = vmul.f32 %v1232, 1.442695
  %v1243 = vpow.pop %v1242
  %v1244 = vmul.f32 %v1233, 1.442695
  %v1245 = vpow.pop %v1244
  %v1246 = vmul.f32 %v1234, 1.442695
  %v1247 = vpow.pop %v1246
  %v1248 = vmul.f32 %v1235, 1.442695
  %v1249 = vpow.pop %v1248
  %v1250 = vmul.f32 %v1236, 1.442695
  %v1251 = vpow.pop %v1250
  %v1252 = vmul.f32 %v1237, 1.442695
  %v1253 = vpow.pop %v1252
  %v1254 = vsel %vm1205, %v1239, 0.0
  %1255 = vadd.xlane.f32.xlu0 %v1254
  %v1256 = vpop.xlane.xlu0 %1255
  %v1257 = vsel %vm1205, %v1241, 0.0
  %1258 = vadd.xlane.f32.xlu0 %v1257
  %v1259 = vpop.xlane.xlu0 %1258
  %v1260 = vsel %vm1205, %v1243, 0.0
  %1261 = vadd.xlane.f32.xlu0 %v1260
  %v1262 = vpop.xlane.xlu0 %1261
  %v1263 = vsel %vm1205, %v1245, 0.0
  %1264 = vadd.xlane.f32.xlu0 %v1263
  %v1265 = vpop.xlane.xlu0 %1264
  %v1266 = vsel %vm1205, %v1247, 0.0
  %1267 = vadd.xlane.f32.xlu0 %v1266
  %v1268 = vpop.xlane.xlu0 %1267
  %v1269 = vsel %vm1205, %v1249, 0.0
  %1270 = vadd.xlane.f32.xlu0 %v1269
  %v1271 = vpop.xlane.xlu0 %1270
  %v1272 = vsel %vm1205, %v1251, 0.0
  %1273 = vadd.xlane.f32.xlu0 %v1272
  %v1274 = vpop.xlane.xlu0 %1273
  %v1275 = vsel %vm1205, %v1253, 0.0
  %1276 = vadd.xlane.f32.xlu0 %v1275
  %v1277 = vpop.xlane.xlu0 %1276
  %v1278 = vrcp.pop %v1256
  %v1279 = vrcp.pop %v1259
  %v1280 = vrcp.pop %v1262
  %v1281 = vrcp.pop %v1265
  %v1282 = vrcp.pop %v1268
  %v1283 = vrcp.pop %v1271
  %v1284 = vrcp.pop %v1274
  %v1285 = vrcp.pop %v1277
  %v1286 = vmul.f32 %v1239, %v1278
  %v1287 = vmul.f32 %v1241, %v1279
  %v1288 = vmul.f32 %v1243, %v1280
  %v1289 = vmul.f32 %v1245, %v1281
  %v1290 = vmul.f32 %v1247, %v1282
  %v1291 = vmul.f32 %v1249, %v1283
  %v1292 = vmul.f32 %v1251, %v1284
  %v1293 = vmul.f32 %v1253, %v1285
  %vm1294 = vcmp.eq.s32.totalorder %v1188, %v1071
  %v1295 = vsel %vm1294, 1, 0
  %v1296 = vcvt.s32.f32 %v1295
  %v1298 = vsel %vm1205, %v1296, 0
  %1300 = vmatpush.msra.mxu0 0.0
  %1301 = vmatpush.msra.mxu0 0.0
  %1302 = vmatpush.msra.mxu0 0.0
  %1303 = vmatpush.msra.mxu0 0.0
  %1304 = vmatpush.msra.mxu0 0.0
  %1305 = vmatpush.msra.mxu0 0.0
  %1306 = vmatpush.msra.mxu0 0.0
  %1307 = vmatpush.msra.mxu0 0.0
  %1308 = vmatpush.msra.mxu0 %v1293
  %1309 = vmatpush.msra.mxu0 %v1292
  %1310 = vmatpush.msra.mxu0 %v1291
  %1311 = vmatpush.msra.mxu0 %v1290
  %1312 = vmatpush.msra.mxu0 %v1289
  %1313 = vmatpush.msra.mxu0 %v1288
  %1314 = vmatpush.msra.mxu0 %v1287
  %1315 = vmatpush.msra.mxu0 %v1286
  %1316 = vmatmul.f32.gmra.mxu0 %v1298
  %v1317 = vpop.f32.mrf.mxu0
  %v1318 = vadd.f32 0.0, %v1317
  %1319 = vdwg.mxu0
  %v1321 = vsel %vm1205, %v1318, 0
  %1323 = vmatpush.msra.mxu0 0.0
  %1324 = vmatpush.msra.mxu0 0.0
  %1325 = vmatpush.msra.mxu0 0.0
  %1326 = vmatpush.msra.mxu0 0.0
  %1327 = vmatpush.msra.mxu0 0.0
  %1328 = vmatpush.msra.mxu0 0.0
  %1329 = vmatpush.msra.mxu0 0.0
  %1330 = vmatpush.msra.mxu0 0.0
  %1331 = vmatpush.msra.mxu0 %v1020
  %1332 = vmatpush.msra.mxu0 %v945
  %1333 = vmatpush.msra.mxu0 %v870
  %1334 = vmatpush.msra.mxu0 %v795
  %1335 = vmatpush.msra.mxu0 %v720
  %1336 = vmatpush.msra.mxu0 %v645
  %1337 = vmatpush.msra.mxu0 %v570
  %1338 = vmatpush.msra.mxu0 %v495
  %1339 = vmatmul.f32.gmra.mxu0 %v1321
  %v1340 = vpop.f32.mrf.mxu0
  %v1341 = vadd.f32 0.0, %v1340
  %1342 = vdwg.mxu0
  %v1343 = vld [vmem:[%s4] sm:$0xff]
  %v1344 = vld [vmem:[%s4 + $0x8] sm:$0xff]
  %v1345 = vld [vmem:[%s4 + $0x10] sm:$0xff]
  %v1346 = vld [vmem:[%s4 + $0x18] sm:$0xff]
  %v1347 = vld [vmem:[%s4 + $0x20] sm:$0xff]
  %v1348 = vld [vmem:[%s4 + $0x28] sm:$0xff]
  %v1349 = vld [vmem:[%s4 + $0x30] sm:$0xff]
  %v1350 = vld [vmem:[%s4 + $0x38] sm:$0xff]
  %v1351 = vld [vmem:[%s4 + $0x40] sm:$0xff]
  %v1352 = vld [vmem:[%s4 + $0x48] sm:$0xff]
  %v1353 = vld [vmem:[%s4 + $0x50] sm:$0xff]
  %v1354 = vld [vmem:[%s4 + $0x58] sm:$0xff]
  %v1355 = vld [vmem:[%s4 + $0x60] sm:$0xff]
  %v1356 = vld [vmem:[%s4 + $0x68] sm:$0xff]
  %v1357 = vld [vmem:[%s4 + $0x70] sm:$0xff]
  %v1358 = vld [vmem:[%s4 + $0x78] sm:$0xff]
  %v1359 = vld [vmem:[%s5] sm:$0x1]
  %v1361 = vperm.slane %v1359, 0
  %1363 = vmatpush.msra.mxu0 %v1358
  %1364 = vmatpush.msra.mxu0 %v1357
  %1365 = vmatpush.msra.mxu0 %v1356
  %1366 = vmatpush.msra.mxu0 %v1355
  %1367 = vmatpush.msra.mxu0 %v1354
  %1368 = vmatpush.msra.mxu0 %v1353
  %1369 = vmatpush.msra.mxu0 %v1352
  %1370 = vmatpush.msra.mxu0 %v1351
  %1371 = vmatpush.msra.mxu0 %v1350
  %1372 = vmatpush.msra.mxu0 %v1349
  %1373 = vmatpush.msra.mxu0 %v1348
  %1374 = vmatpush.msra.mxu0 %v1347
  %1375 = vmatpush.msra.mxu0 %v1346
  %1376 = vmatpush.msra.mxu0 %v1345
  %1377 = vmatpush.msra.mxu0 %v1344
  %1378 = vmatpush.msra.mxu0 %v1343
  %1379 = vmatmul.f32.gmra.mxu0 %v1341
  %v1380 = vpop.f32.mrf.mxu0
  %v1381 = vadd.f32 %v1361, %v1380
  %1382 = vdwg.mxu0
  %vm1383 = vcmp.ge.f32.partialorder %v1381, 0.0
  %v1384 = vmul.f32 %v1381, 0.01
  %v1385 = vsel %vm1383, %v1381, %v1384
  %v1386 = vld [vmem:[%s6] sm:$0xff]
  %v1387 = vld [vmem:[%s6 + $0x8] sm:$0xff]
  %v1388 = vld [vmem:[%s6 + $0x10] sm:$0xf]
  %v1389 = vld [vmem:[%s7] sm:$0x1]
  %v1391 = vperm.slane %v1389, 0
  %v1394 = vsel %vm88, %v1385, 0
  %vm1396 = vcmask 1043456
  %v1398 = vsel %vm1396, %v1388, 0
  %1400 = vmatpush.msra.mxu0 0.0
  %1401 = vmatpush.msra.mxu0 0.0
  %1402 = vmatpush.msra.mxu0 0.0
  %1403 = vmatpush.msra.mxu0 0.0
  %1404 = vmatpush.msra.mxu0 0.0
  %1405 = vmatpush.msra.mxu0 0.0
  %1406 = vmatpush.msra.mxu0 0.0
  %1407 = vmatpush.msra.mxu0 0.0
  %1408 = vmatpush.msra.mxu0 0.0
  %1409 = vmatpush.msra.mxu0 0.0
  %1410 = vmatpush.msra.mxu0 0.0
  %1411 = vmatpush.msra.mxu0 0.0
  %1412 = vmatpush.msra.mxu0 0.0
  %1413 = vmatpush.msra.mxu0 %v1398
  %1414 = vmatpush.msra.mxu0 %v1387
  %1415 = vmatpush.msra.mxu0 %v1386
  %1416 = vmatmul.f32.gmra.mxu0 %v1394
  %v1417 = vpop.f32.mrf.mxu0
  %v1418 = vadd.f32 %v1391, %v1417
  %1419 = vdwg.mxu0
  %vm1420 = vcmp.ge.f32.partialorder %v1418, 0.0
  %v1421 = vmul.f32 %v1418, 0.01
  %v1422 = vsel %vm1420, %v1418, %v1421
  %vm1423 = vcmask 80896
  %1424 = vst.msk [vmem:[%s8] sm:$0xff] %vm1423, %v1422
  // Predicated region
  $region34: #{forward.1} parent=0 // pred_check
    _
  $region35: #{forward.1} parent=0 // pred_check_branch
    %1426 = sbr.rel (0) target = $region37
  $region36: #{forward.1} parent=0 // pred_region
    _
  $region37: #{forward.1} parent=0 // pred_fallthru
    _
  // Predicated region
  $region38: #{forward.1} parent=0 // pred_check
    _
  $region39: #{forward.1} parent=0 // pred_check_branch
    %1428 = sbr.rel (0) target = $region41
  $region40: #{forward.1} parent=0 // pred_region
    _
  $region41: #{forward.1} parent=0 // pred_fallthru
    _

</llo_original>
